<compile_context>
chip_gen: v5e
topology: v5e:2x2
jax: 0.10.0
libtpu: 0.0.40
codegen_flags: <defaults>
</compile_context>

<pallas_src>
import functools

import jax
import jax.numpy as jnp
from jax.experimental import pallas as pl
from jax.experimental.pallas import tpu as pltpu


def _round_up(n, m):
    return ((n + m - 1) // m) * m


def _fused_mlp_kernel(*refs, num_layers):
    """refs = (x_ref, w0, b0, w1, b1, ..., w_{L-1}, b_{L-1}, o_ref).

    Computes the full MLP on one (TB, d_in_pad) batch tile. Weights/biases are
    VMEM-resident; intermediates live in vregs/VMEM and never touch HBM.
    """
    x_ref = refs[0]
    o_ref = refs[-1]
    h = x_ref[...]                                   # (TB, d0), f32
    for l in range(num_layers):
        w_ref = refs[1 + 2 * l]
        b_ref = refs[2 + 2 * l]
        # MXU matmul; cast activations to the weight dtype (bf16 path),
        # accumulate in f32.
        h = jnp.dot(h.astype(w_ref.dtype), w_ref[...],
                    preferred_element_type=jnp.float32)
        h = h + b_ref[...]                           # f32 epilogue (bias broadcast)
        if l < num_layers - 1:
            h = jnp.maximum(h, 0.0)                  # ReLU on hidden layers only
    o_ref[...] = h.astype(o_ref.dtype)


def init_net_params(key, layer_sizes):
    """Deterministic PyTorch-Linear-shaped params: W_i (out, in), b_i (out,)."""
    params = []
    for i in range(len(layer_sizes) - 1):
        d_in, d_out = layer_sizes[i], layer_sizes[i + 1]
        key, wk, bk = jax.random.split(key, 3)
        bound = 1.0 / jnp.sqrt(jnp.float32(d_in))    # nn.Linear default range
        w = jax.random.uniform(wk, (d_out, d_in), jnp.float32, -bound, bound)
        b = jax.random.uniform(bk, (d_out,), jnp.float32, -bound, bound)
        params.append((w, b))
    return params


def prepare_net_params(params, input_dim, weight_dtype=jnp.float32):
    """One-time prep (hoisted out of the forward path):
    transpose (out,in)->(in,out), zero-pad every dim to a multiple of 128,
    cast weights to `weight_dtype`; biases stay f32 (f32 epilogue)."""
    dims = [input_dim] + [w.shape[0] for (w, _) in params]
    dims_pad = [_round_up(d, 128) for d in dims]
    prepped = []
    for l, (w, b) in enumerate(params):
        d_in, d_out = dims[l], dims[l + 1]
        d_in_p, d_out_p = dims_pad[l], dims_pad[l + 1]
        w_t = jnp.zeros((d_in_p, d_out_p), weight_dtype)
        w_t = w_t.at[:d_in, :d_out].set(w.T.astype(weight_dtype))
        b_p = jnp.zeros((1, d_out_p), jnp.float32)
        b_p = b_p.at[:, :d_out].set(b.astype(jnp.float32).reshape(1, -1))
        prepped.append((w_t, b_p))
    return prepped, dims, dims_pad


def net_forward_fused(x, prepped, dims, dims_pad, *, batch_tile=128):
    """Fused forward pass. x: any shape flattening to (-1, input_dim)."""
    input_dim, output_dim = dims[0], dims[-1]
    d_in_p, d_out_p = dims_pad[0], dims_pad[-1]
    num_layers = len(prepped)

    x = x.reshape(-1, input_dim).astype(jnp.float32)     # == x.view(-1, input_dim)
    B = x.shape[0]
    TB = min(batch_tile, _round_up(B, 8))                 # batch tile, multiple of 8
    B_pad = _round_up(B, TB)
    x_pad = jnp.zeros((B_pad, d_in_p), jnp.float32).at[:B, :input_dim].set(x)

    # BlockSpecs: x / logits stream one (TB, .) tile per grid step; weights and
    # biases use a constant index_map so they stay VMEM-resident across steps.
    in_specs = [pl.BlockSpec((TB, d_in_p), lambda i: (i, 0))]
    flat_params = []
    for (w_t, b_p) in prepped:
        in_specs.append(pl.BlockSpec(w_t.shape, lambda i: (0, 0)))
        in_specs.append(pl.BlockSpec(b_p.shape, lambda i: (0, 0)))
        flat_params += [w_t, b_p]
    out_specs = pl.BlockSpec((TB, d_out_p), lambda i: (i, 0))

    flops = 2 * B_pad * sum(dims_pad[l] * dims_pad[l + 1] for l in range(num_layers))
    bytes_accessed = (x_pad.size * x_pad.dtype.itemsize
                      + sum(int(p.size) * p.dtype.itemsize for p in flat_params)
                      + B_pad * d_out_p * 4)

    kernel = functools.partial(_fused_mlp_kernel, num_layers=num_layers)
    out = pl.pallas_call(
        kernel,
        out_shape=jax.ShapeDtypeStruct((B_pad, d_out_p), jnp.float32),
        grid=(B_pad // TB,),
        in_specs=in_specs,
        out_specs=out_specs,
        compiler_params=pltpu.CompilerParams(
            # batch tiles are independent -> shard across TCs on v7x
            dimension_semantics=("parallel",),
        ),
        cost_estimate=pl.CostEstimate(
            flops=flops, transcendentals=0, bytes_accessed=bytes_accessed),
    )(x_pad, *flat_params)

    return out[:B, :output_dim]                           # drop batch / lane padding


if __name__ == "__main__":
    # Small but module-consistent shapes: MNIST-style 28x28 inputs, smaller hiddens.
    batch = 64
    input_dim = 28 * 28                                   # 784 (padded to 896 in-kernel)
    hidden_layer_sizes = [256, 256]
    output_dim = 10                                       # padded to 128 in-kernel
    layer_sizes = [input_dim] + hidden_layer_sizes + [output_dim]

    key = jax.random.PRNGKey(0)
    key, xk = jax.random.split(key)
    # Input arrives as (B, 1, 28, 28) like MNIST tensors; forward flattens it.
    x = jax.random.normal(xk, (batch, 1, 28, 28), dtype=jnp.float32)
    params = init_net_params(key, layer_sizes)

    # Pure-JAX reference (same math as the PyTorch module).
    ref = x.reshape(-1, input_dim)
    for idx, (w, b) in enumerate(params):
        ref = ref @ w.T + b
        if idx < len(params) - 1:
            ref = jnp.maximum(ref, 0.0)

    # --- f32 weights: exact-path check (batch_tile=32 -> grid=(2,), pipelined) ---
    prepped_f32, dims, dims_pad = prepare_net_params(params, input_dim, jnp.float32)
    logits = net_forward_fused(x, prepped_f32, dims, dims_pad, batch_tile=32)
    logits = jax.block_until_ready(logits)
    assert logits.shape == (batch, output_dim)
    assert jnp.allclose(logits, ref, atol=1e-3, rtol=1e-3)

    # --- bf16 weights: halves weight HBM traffic; f32 accumulate + epilogue ---
    prepped_bf16, _, _ = prepare_net_params(params, input_dim, jnp.bfloat16)
    logits_bf16 = net_forward_fused(x, prepped_bf16, dims, dims_pad, batch_tile=32)
    logits_bf16 = jax.block_until_ready(logits_bf16)
    assert logits_bf16.shape == (batch, output_dim)
    assert jnp.allclose(logits_bf16, ref, atol=2e-1, rtol=5e-2)

    print("KERNEL_OK")
</pallas_src>

<mosaic_0001>
module attributes {stable_mosaic.version = 11 : i64} {
  func.func @_fused_mlp_kernel(%arg0: i32, %arg1: memref<32x896xf32, #tpu.memory_space<vmem>>, %arg2: memref<896x256xf32, #tpu.memory_space<vmem>>, %arg3: memref<1x256xf32, #tpu.memory_space<vmem>>, %arg4: memref<256x256xf32, #tpu.memory_space<vmem>>, %arg5: memref<1x256xf32, #tpu.memory_space<vmem>>, %arg6: memref<256x128xf32, #tpu.memory_space<vmem>>, %arg7: memref<1x128xf32, #tpu.memory_space<vmem>>, %arg8: memref<32x128xf32, #tpu.memory_space<vmem>>) attributes {dimension_semantics = [#tpu.dimension_semantics<parallel>], iteration_bounds = array<i64: 2>, scalar_prefetch = 0 : i64, scratch_operands = 0 : i64, tpu.core_type = #tpu.core_type<tc>, window_params = [{transform_indices = @transform_0, window_bounds = array<i64: 32, 896>}, {pipeline_mode = #tpu.pipeline_mode<synchronous>, transform_indices = @transform_1, window_bounds = array<i64: 896, 256>}, {pipeline_mode = #tpu.pipeline_mode<synchronous>, transform_indices = @transform_2, window_bounds = array<i64: 1, 256>}, {pipeline_mode = #tpu.pipeline_mode<synchronous>, transform_indices = @transform_3, window_bounds = array<i64: 256, 256>}, {pipeline_mode = #tpu.pipeline_mode<synchronous>, transform_indices = @transform_4, window_bounds = array<i64: 1, 256>}, {pipeline_mode = #tpu.pipeline_mode<synchronous>, transform_indices = @transform_5, window_bounds = array<i64: 256, 128>}, {pipeline_mode = #tpu.pipeline_mode<synchronous>, transform_indices = @transform_6, window_bounds = array<i64: 1, 128>}, {transform_indices = @transform_7, window_bounds = array<i64: 32, 128>}]} {
    %c0 = arith.constant 0 : index
    %c0_0 = arith.constant 0 : index
    %0 = vector.load %arg1[%c0, %c0_0] : memref<32x896xf32, #tpu.memory_space<vmem>>, vector<32x896xf32>
    %c0_1 = arith.constant 0 : index
    %c0_2 = arith.constant 0 : index
    %1 = vector.load %arg2[%c0_1, %c0_2] : memref<896x256xf32, #tpu.memory_space<vmem>>, vector<896x256xf32>
    %cst = arith.constant dense<0.000000e+00> : vector<32x256xf32>
    %2 = tpu.matmul %0, %1, %cst {dimension_numbers = #tpu.dot_dimension_numbers<[1], [0], [0], [1], [0, 0, 1, 1], [], []>} : vector<32x896xf32>, vector<896x256xf32>, vector<32x256xf32> -> vector<32x256xf32>
    %c0_3 = arith.constant 0 : index
    %c0_4 = arith.constant 0 : index
    %3 = vector.load %arg3[%c0_3, %c0_4] : memref<1x256xf32, #tpu.memory_space<vmem>>, vector<1x256xf32>
    %4 = vector.broadcast %3 : vector<1x256xf32> to vector<32x256xf32>
    %5 = arith.addf %2, %4 : vector<32x256xf32>
    %cst_5 = arith.constant 0.000000e+00 : f32
    %6 = vector.broadcast %cst_5 : f32 to vector<32x256xf32>
    %7 = arith.maximumf %5, %6 : vector<32x256xf32>
    %c0_6 = arith.constant 0 : index
    %c0_7 = arith.constant 0 : index
    %8 = vector.load %arg4[%c0_6, %c0_7] : memref<256x256xf32, #tpu.memory_space<vmem>>, vector<256x256xf32>
    %cst_8 = arith.constant dense<0.000000e+00> : vector<32x256xf32>
    %9 = tpu.matmul %7, %8, %cst_8 {dimension_numbers = #tpu.dot_dimension_numbers<[1], [0], [0], [1], [0, 0, 1, 1], [], []>} : vector<32x256xf32>, vector<256x256xf32>, vector<32x256xf32> -> vector<32x256xf32>
    %c0_9 = arith.constant 0 : index
    %c0_10 = arith.constant 0 : index
    %10 = vector.load %arg5[%c0_9, %c0_10] : memref<1x256xf32, #tpu.memory_space<vmem>>, vector<1x256xf32>
    %11 = vector.broadcast %10 : vector<1x256xf32> to vector<32x256xf32>
    %12 = arith.addf %9, %11 : vector<32x256xf32>
    %cst_11 = arith.constant 0.000000e+00 : f32
    %13 = vector.broadcast %cst_11 : f32 to vector<32x256xf32>
    %14 = arith.maximumf %12, %13 : vector<32x256xf32>
    %c0_12 = arith.constant 0 : index
    %c0_13 = arith.constant 0 : index
    %15 = vector.load %arg6[%c0_12, %c0_13] : memref<256x128xf32, #tpu.memory_space<vmem>>, vector<256x128xf32>
    %cst_14 = arith.constant dense<0.000000e+00> : vector<32x128xf32>
    %16 = tpu.matmul %14, %15, %cst_14 {dimension_numbers = #tpu.dot_dimension_numbers<[1], [0], [0], [1], [0, 0, 1, 1], [], []>} : vector<32x256xf32>, vector<256x128xf32>, vector<32x128xf32> -> vector<32x128xf32>
    %c0_15 = arith.constant 0 : index
    %c0_16 = arith.constant 0 : index
    %17 = vector.load %arg7[%c0_15, %c0_16] : memref<1x128xf32, #tpu.memory_space<vmem>>, vector<1x128xf32>
    %18 = vector.broadcast %17 : vector<1x128xf32> to vector<32x128xf32>
    %19 = arith.addf %16, %18 : vector<32x128xf32>
    %c0_17 = arith.constant 0 : index
    %c0_18 = arith.constant 0 : index
    %20 = vector.load %arg8[%c0_17, %c0_18] : memref<32x128xf32, #tpu.memory_space<vmem>>, vector<32x128xf32>
    tpu.vector_store %arg8[%c0_17, %c0_18], %19 {strides = array<i32>} : memref<32x128xf32, #tpu.memory_space<vmem>>, vector<32x128xf32>,
    return
  }
  func.func @transform_0(%arg0: i32) -> (i32, i32) {
    %c0_i32 = arith.constant 0 : i32
    %c0_i32_0 = arith.constant 0 : i32
    return %arg0, %c0_i32 : i32, i32
  }
  func.func @transform_1(%arg0: i32) -> (i32, i32) {
    %c0_i32 = arith.constant 0 : i32
    %c0_i32_0 = arith.constant 0 : i32
    %c0_i32_1 = arith.constant 0 : i32
    return %c0_i32, %c0_i32_0 : i32, i32
  }
  func.func @transform_2(%arg0: i32) -> (i32, i32) {
    %c0_i32 = arith.constant 0 : i32
    %c0_i32_0 = arith.constant 0 : i32
    %c0_i32_1 = arith.constant 0 : i32
    return %c0_i32, %c0_i32_0 : i32, i32
  }
  func.func @transform_3(%arg0: i32) -> (i32, i32) {
    %c0_i32 = arith.constant 0 : i32
    %c0_i32_0 = arith.constant 0 : i32
    %c0_i32_1 = arith.constant 0 : i32
    return %c0_i32, %c0_i32_0 : i32, i32
  }
  func.func @transform_4(%arg0: i32) -> (i32, i32) {
    %c0_i32 = arith.constant 0 : i32
    %c0_i32_0 = arith.constant 0 : i32
    %c0_i32_1 = arith.constant 0 : i32
    return %c0_i32, %c0_i32_0 : i32, i32
  }
  func.func @transform_5(%arg0: i32) -> (i32, i32) {
    %c0_i32 = arith.constant 0 : i32
    %c0_i32_0 = arith.constant 0 : i32
    %c0_i32_1 = arith.constant 0 : i32
    return %c0_i32, %c0_i32_0 : i32, i32
  }
  func.func @transform_6(%arg0: i32) -> (i32, i32) {
    %c0_i32 = arith.constant 0 : i32
    %c0_i32_0 = arith.constant 0 : i32
    %c0_i32_1 = arith.constant 0 : i32
    return %c0_i32, %c0_i32_0 : i32, i32
  }
  func.func @transform_7(%arg0: i32) -> (i32, i32) {
    %c0_i32 = arith.constant 0 : i32
    %c0_i32_0 = arith.constant 0 : i32
    return %arg0, %c0_i32 : i32, i32
  }
}

</mosaic_0001>

<llo_original>
// kernel: tpu_custom_call.1
$region0: #{tpu_custom_call.1}
  #allocation0 [shape = 'u32[]', space=smem, size = 0x4, offset = 0x4, fixed_abs, tag = 'smem constant byte address 0x4 - core index']
  #allocation1 [shape = 'u32[72,128]{1,0:T(1,128)}', space=vmem, size = 0x9000, scoped, tag = 'internal scratch']
  %s0 = inlined_call_operand.hbm [shape: f32[64,896], index: 0, kind: input, shape index: {}]
  %s1 = inlined_call_operand.hbm [shape: f32[896,256], index: 1, kind: input, shape index: {}]
  %s2 = inlined_call_operand.hbm [shape: f32[1,256], index: 2, kind: input, shape index: {}]
  %s3 = inlined_call_operand.hbm [shape: f32[256,256], index: 3, kind: input, shape index: {}]
  %s4 = inlined_call_operand.vmem [shape: f32[1,256], index: 4, kind: input, shape index: {}]
  %s5 = inlined_call_operand.hbm [shape: f32[256,128], index: 5, kind: input, shape index: {}]
  %s6 = inlined_call_operand.vmem [shape: f32[1,128], index: 6, kind: input, shape index: {}]
  %s7 = inlined_call_operand.hbm [shape: f32[64,128], index: 7, kind: output, shape index: {}]
  %s8 = sld [smem:[#allocation0]]
  $region81: #{tpu_custom_call.1} parent=0
    _
  %s10 = ssub.s32 1, %s8
  %s11 = scalar_select 0, %s10, %s8
  $region1: #{tpu_custom_call.1} parent=0
    #allocation2 [shape = 'u8[229376]{0}', space=vmem, size = 0x38000, scoped, tag = 'input window, operand 0']
    #allocation3 [shape = 's32[2]{0}', space=sflag, size = 0x8, scoped, tag = 'scoped memory for tpu_custom_call.1']
    #allocation4 [shape = 's32[2]{0}', space=sflag, size = 0x8, scoped, tag = 'scoped memory for tpu_custom_call.1']
    #allocation5 [shape = 'u8[917504]{0}', space=vmem, size = 0xe0000, scoped, tag = 'input window, operand 1, single buffered']
    #allocation6 [shape = 's32[1]{0}', space=sflag, size = 0x4, scoped, tag = 'scoped memory for tpu_custom_call.1']
    #allocation7 [shape = 'u8[1024]{0}', space=vmem, size = 0x400, scoped, tag = 'input window, operand 2, single buffered']
    #allocation8 [shape = 'u8[262144]{0}', space=vmem, size = 0x40000, scoped, tag = 'input window, operand 3, single buffered']
    #allocation9 [shape = 's32[1]{0}', space=sflag, size = 0x4, scoped, tag = 'scoped memory for tpu_custom_call.1']
    #allocation10 [shape = 'u8[131072]{0}', space=vmem, size = 0x20000, scoped, tag = 'input window, operand 5, single buffered']
    #allocation11 [shape = 'u8[32768]{0}', space=vmem, size = 0x8000, scoped, tag = 'output window, operand 0']
    %12 = vsyncpa [#allocation3], 0
    %s13 = scalar_lea.sflag [#allocation3], 1
    %14 = vsyncpa %s13, 0
    %15 = vsyncpa [#allocation6], 0
    %16 = vsyncpa [#allocation9], 0
    %17 = vsyncpa [#allocation4], 0
    %s18 = scalar_lea.sflag [#allocation4], 1
    %19 = vsyncpa %s18, 0
    loop: start=0, step=1, limit=4
    $region2: #{tpu_custom_call.1} parent=1 // loop_pre_header
      _
    $region3: #{tpu_custom_call.1} parent=1 // loop_header
      %s21 = sphi 0, %s25
      %p22 = scmp.ge.s32.totalorder %s21, 4
      %s31 = sphi 0, %s33
      %s34 = sphi 0, %s31
      %s35 = sphi 0, %s34
      %s51 = sphi 0, %s35
      %s55 = sphi 0, %s55
      %s57 = sphi 0, %s55
      %s58 = sphi 0, %s57
      %s72 = sphi 0, %s58
      %s76 = sphi 0, %s76
      %s78 = sphi 0, %s76
      %s79 = sphi 0, %s78
      %s93 = sphi 0, %s79
      %s97 = sphi 0, %s97
      %s99 = sphi 0, %s97
      %s100 = sphi 0, %s99
      %s114 = sphi 0, %s100
      %s118 = sphi 0, %s118
      %s120 = sphi 0, %s118
      %s121 = sphi 0, %s120
      %s135 = sphi 0, %s121
      %s139 = sphi 0, %s139
      %s141 = sphi 0, %s139
      %s142 = sphi 0, %s141
      %s156 = sphi 0, %s142
      %s160 = sphi 0, %s160
      %s162 = sphi 0, %s160
      %s163 = sphi 0, %s162
      %s177 = sphi 0, %s163
      %s183 = sphi 0, %s185
      %s186 = sphi 0, %s183
      %s187 = sphi 0, %s186
      %s203 = sphi 0, %s187
    $region4: #{tpu_custom_call.1} parent=1 // loop_header_branch
      %24 = sbr.rel (%p22) target = $region8
    $region5: #{tpu_custom_call.1} parent=1 // loop_body
      %s26 = ssub.s32 %s21, 1
      %s27 = ssub.s32 %s21, 2
      %s28 = sadd.s32 %s21, 1
      %s29 = ssub.s32 %s21, %s28
      %p30 = scmp.eq.s32.totalorder %s29, 0
      %s32 = sadd.s32 %s31, 1
      %s33 = scalar_select %p30, %s31, %s32
      %p36 = pneg %p30
      %p37 = scmp.eq.s32.totalorder %s21, 1
      %p38 = por %p36, %p37
      %p39 = scmp.ne.s32.totalorder %s31, %s34
      %p40 = scmp.eq.s32.totalorder %s21, 0
      %p41 = por %p39, %p40
      %p42 = scmp.ne.s32.totalorder %s31, %s34
      %p43 = scmp.eq.s32.totalorder %s26, 1
      %p44 = por %p42, %p43
      %p45 = scmp.ne.s32.totalorder %s34, %s35
      %p46 = scmp.eq.s32.totalorder %s26, 0
      %p47 = por %p45, %p46
      %p48 = scmp.ne.s32.totalorder %s34, %s35
      %p49 = scmp.eq.s32.totalorder %s27, 1
      %p50 = por %p48, %p49
      %p52 = scmp.ne.s32.totalorder %s35, %s51
      %p53 = scmp.eq.s32.totalorder %s27, 0
      %p54 = por %p52, %p53
      %s56 = sadd.s32 %s55, 1
      %p59 = scmp.eq.s32.totalorder %s21, 1
      %p60 = scmp.ne.s32.totalorder %s55, %s57
      %p61 = scmp.eq.s32.totalorder %s21, 0
      %p62 = por %p60, %p61
      %p63 = scmp.ne.s32.totalorder %s55, %s57
      %p64 = scmp.eq.s32.totalorder %s26, 1
      %p65 = por %p63, %p64
      %p66 = scmp.ne.s32.totalorder %s57, %s58
      %p67 = scmp.eq.s32.totalorder %s26, 0
      %p68 = por %p66, %p67
      %p69 = scmp.ne.s32.totalorder %s57, %s58
      %p70 = scmp.eq.s32.totalorder %s27, 1
      %p71 = por %p69, %p70
      %p73 = scmp.ne.s32.totalorder %s58, %s72
      %p74 = scmp.eq.s32.totalorder %s27, 0
      %p75 = por %p73, %p74
      %s77 = sadd.s32 %s76, 1
      %p80 = scmp.eq.s32.totalorder %s21, 1
      %p81 = scmp.ne.s32.totalorder %s76, %s78
      %p82 = scmp.eq.s32.totalorder %s21, 0
      %p83 = por %p81, %p82
      %p84 = scmp.ne.s32.totalorder %s76, %s78
      %p85 = scmp.eq.s32.totalorder %s26, 1
      %p86 = por %p84, %p85
      %p87 = scmp.ne.s32.totalorder %s78, %s79
      %p88 = scmp.eq.s32.totalorder %s26, 0
      %p89 = por %p87, %p88
      %p90 = scmp.ne.s32.totalorder %s78, %s79
      %p91 = scmp.eq.s32.totalorder %s27, 1
      %p92 = por %p90, %p91
      %p94 = scmp.ne.s32.totalorder %s79, %s93
      %p95 = scmp.eq.s32.totalorder %s27, 0
      %p96 = por %p94, %p95
      %s98 = sadd.s32 %s97, 1
      %p101 = scmp.eq.s32.totalorder %s21, 1
      %p102 = scmp.ne.s32.totalorder %s97, %s99
      %p103 = scmp.eq.s32.totalorder %s21, 0
      %p104 = por %p102, %p103
      %p105 = scmp.ne.s32.totalorder %s97, %s99
      %p106 = scmp.eq.s32.totalorder %s26, 1
      %p107 = por %p105, %p106
      %p108 = scmp.ne.s32.totalorder %s99, %s100
      %p109 = scmp.eq.s32.totalorder %s26, 0
      %p110 = por %p108, %p109
      %p111 = scmp.ne.s32.totalorder %s99, %s100
      %p112 = scmp.eq.s32.totalorder %s27, 1
      %p113 = por %p111, %p112
      %p115 = scmp.ne.s32.totalorder %s100, %s114
      %p116 = scmp.eq.s32.totalorder %s27, 0
      %p117 = por %p115, %p116
      %s119 = sadd.s32 %s118, 1
      %p122 = scmp.eq.s32.totalorder %s21, 1
      %p123 = scmp.ne.s32.totalorder %s118, %s120
      %p124 = scmp.eq.s32.totalorder %s21, 0
      %p125 = por %p123, %p124
      %p126 = scmp.ne.s32.totalorder %s118, %s120
      %p127 = scmp.eq.s32.totalorder %s26, 1
      %p128 = por %p126, %p127
      %p129 = scmp.ne.s32.totalorder %s120, %s121
      %p130 = scmp.eq.s32.totalorder %s26, 0
      %p131 = por %p129, %p130
      %p132 = scmp.ne.s32.totalorder %s120, %s121
      %p133 = scmp.eq.s32.totalorder %s27, 1
      %p134 = por %p132, %p133
      %p136 = scmp.ne.s32.totalorder %s121, %s135
      %p137 = scmp.eq.s32.totalorder %s27, 0
      %p138 = por %p136, %p137
      %s140 = sadd.s32 %s139, 1
      %p143 = scmp.eq.s32.totalorder %s21, 1
      %p144 = scmp.ne.s32.totalorder %s139, %s141
      %p145 = scmp.eq.s32.totalorder %s21, 0
      %p146 = por %p144, %p145
      %p147 = scmp.ne.s32.totalorder %s139, %s141
      %p148 = scmp.eq.s32.totalorder %s26, 1
      %p149 = por %p147, %p148
      %p150 = scmp.ne.s32.totalorder %s141, %s142
      %p151 = scmp.eq.s32.totalorder %s26, 0
      %p152 = por %p150, %p151
      %p153 = scmp.ne.s32.totalorder %s141, %s142
      %p154 = scmp.eq.s32.totalorder %s27, 1
      %p155 = por %p153, %p154
      %p157 = scmp.ne.s32.totalorder %s142, %s156
      %p158 = scmp.eq.s32.totalorder %s27, 0
      %p159 = por %p157, %p158
      %s161 = sadd.s32 %s160, 1
      %p164 = scmp.eq.s32.totalorder %s21, 1
      %p165 = scmp.ne.s32.totalorder %s160, %s162
      %p166 = scmp.eq.s32.totalorder %s21, 0
      %p167 = por %p165, %p166
      %p168 = scmp.ne.s32.totalorder %s160, %s162
      %p169 = scmp.eq.s32.totalorder %s26, 1
      %p170 = por %p168, %p169
      %p171 = scmp.ne.s32.totalorder %s162, %s163
      %p172 = scmp.eq.s32.totalorder %s26, 0
      %p173 = por %p171, %p172
      %p174 = scmp.ne.s32.totalorder %s162, %s163
      %p175 = scmp.eq.s32.totalorder %s27, 1
      %p176 = por %p174, %p175
      %p178 = scmp.ne.s32.totalorder %s163, %s177
      %p179 = scmp.eq.s32.totalorder %s27, 0
      %p180 = por %p178, %p179
      %s181 = ssub.s32 %s21, %s28
      %p182 = scmp.eq.s32.totalorder %s181, 0
      %s184 = sadd.s32 %s183, 1
      %s185 = scalar_select %p182, %s183, %s184
      %p188 = pneg %p182
      %p189 = scmp.eq.s32.totalorder %s21, 1
      %p190 = por %p188, %p189
      %p191 = scmp.ne.s32.totalorder %s183, %s186
      %p192 = scmp.eq.s32.totalorder %s21, 0
      %p193 = por %p191, %p192
      %p194 = scmp.ne.s32.totalorder %s183, %s186
      %p195 = scmp.eq.s32.totalorder %s26, 1
      %p196 = por %p194, %p195
      %p197 = scmp.ne.s32.totalorder %s186, %s187
      %p198 = scmp.eq.s32.totalorder %s26, 0
      %p199 = por %p197, %p198
      %p200 = scmp.ne.s32.totalorder %s186, %s187
      %p201 = scmp.eq.s32.totalorder %s27, 1
      %p202 = por %p200, %p201
      %p204 = scmp.ne.s32.totalorder %s187, %s203
      %p205 = scmp.eq.s32.totalorder %s27, 0
      %p206 = por %p204, %p205
      %p207 = scmp.le.s32.totalorder 1, %s21
      %p208 = scmp.lt.s32.totalorder %s21, 3
      %p209 = pnand %p207, %p208
      %p210 = pneg %p209
      // Predicated region
      $region9: #{tpu_custom_call.1} parent=5 // pred_check
        _
      $region10: #{tpu_custom_call.1} parent=5 // pred_check_branch
        %212 = sbr.rel (%p209) target = $region12
      $region11: #{tpu_custom_call.1} parent=5 // pred_region
        %s213 = ssub.s32 %s21, 1
        // Predicated region
        $region13: #{tpu_custom_call.1} parent=11 // pred_check
          %p214 = pneg %p68
        $region14: #{tpu_custom_call.1} parent=11 // pred_check_branch
          %216 = sbr.rel (%p214) target = $region16
        $region15: #{tpu_custom_call.1} parent=11 // pred_region
          %218 = vsyncadd [#allocation6], 0
          %s219 = sshll.u32 %s1, 4
          %s220 = int_to_ptr.hbm [resolvable:$true] %s219
          %s221 = sshll.u32 [#allocation5], 4
          %s222 = int_to_ptr.vmem [resolvable:$true] %s221
          %227 = dma.hbm_to_vmem [thread:$0]  %s220, 28672, %s222, [#allocation6], 256, 256, 16
        $region16: #{tpu_custom_call.1} parent=11 // pred_fallthru
          _
        // Predicated region
        $region17: #{tpu_custom_call.1} parent=11 // pred_check
          %p228 = pneg %p89
        $region18: #{tpu_custom_call.1} parent=11 // pred_check_branch
          %230 = sbr.rel (%p228) target = $region20
        $region19: #{tpu_custom_call.1} parent=11 // pred_region
          %232 = vsyncadd [#allocation6], 0
          %s234 = sshll.u32 %s2, 4
          %s235 = int_to_ptr.hbm [resolvable:$true] %s234
          %s236 = sshll.u32 [#allocation7], 4
          %s237 = int_to_ptr.vmem [resolvable:$true] %s236
          %239 = dma.hbm_to_vmem [thread:$0]  %s235, 32, %s237, [#allocation6]
        $region20: #{tpu_custom_call.1} parent=11 // pred_fallthru
          _
        // Predicated region
        $region21: #{tpu_custom_call.1} parent=11 // pred_check
          %p240 = pneg %p110
        $region22: #{tpu_custom_call.1} parent=11 // pred_check_branch
          %242 = sbr.rel (%p240) target = $region24
        $region23: #{tpu_custom_call.1} parent=11 // pred_region
          %244 = vsyncadd [#allocation9], 0
          %s245 = sshll.u32 %s3, 4
          %s246 = int_to_ptr.hbm [resolvable:$true] %s245
          %s247 = sshll.u32 [#allocation8], 4
          %s248 = int_to_ptr.vmem [resolvable:$true] %s247
          %253 = dma.hbm_to_vmem [thread:$0]  %s246, 8192, %s248, [#allocation9], 256, 256, 16
        $region24: #{tpu_custom_call.1} parent=11 // pred_fallthru
          _
        // Predicated region
        $region25: #{tpu_custom_call.1} parent=11 // pred_check
          %p254 = pneg %p131
        $region26: #{tpu_custom_call.1} parent=11 // pred_check_branch
          %256 = sbr.rel (%p254) target = $region28
        $region27: #{tpu_custom_call.1} parent=11 // pred_region
          _
        $region28: #{tpu_custom_call.1} parent=11 // pred_fallthru
          _
        // Predicated region
        $region29: #{tpu_custom_call.1} parent=11 // pred_check
          %p257 = pneg %p152
        $region30: #{tpu_custom_call.1} parent=11 // pred_check_branch
          %259 = sbr.rel (%p257) target = $region32
        $region31: #{tpu_custom_call.1} parent=11 // pred_region
          %261 = vsyncadd [#allocation9], 0
          %s262 = sshll.u32 %s5, 4
          %s263 = int_to_ptr.hbm [resolvable:$true] %s262
          %s264 = sshll.u32 [#allocation10], 4
          %s265 = int_to_ptr.vmem [resolvable:$true] %s264
          %270 = dma.hbm_to_vmem [thread:$0]  %s263, 4096, %s265, [#allocation9], 128, 128, 8
        $region32: #{tpu_custom_call.1} parent=11 // pred_fallthru
          _
        // Predicated region
        $region33: #{tpu_custom_call.1} parent=11 // pred_check
          %p271 = pneg %p173
        $region34: #{tpu_custom_call.1} parent=11 // pred_check_branch
          %273 = sbr.rel (%p271) target = $region36
        $region35: #{tpu_custom_call.1} parent=11 // pred_region
          _
        $region36: #{tpu_custom_call.1} parent=11 // pred_fallthru
          _
      $region12: #{tpu_custom_call.1} parent=5 // pred_fallthru
        _
      %p274 = scmp.lt.s32.totalorder %s21, 2
      // Predicated region
      $region37: #{tpu_custom_call.1} parent=5 // pred_check
        %p275 = pneg %p274
      $region38: #{tpu_custom_call.1} parent=5 // pred_check_branch
        %277 = sbr.rel (%p275) target = $region40
      $region39: #{tpu_custom_call.1} parent=5 // pred_region
        // Predicated region
        $region41: #{tpu_custom_call.1} parent=39 // pred_check
          %p278 = pneg %p41
        $region42: #{tpu_custom_call.1} parent=39 // pred_check_branch
          %280 = sbr.rel (%p278) target = $region44
        $region43: #{tpu_custom_call.1} parent=39 // pred_region
          %s281 = sand.u32 %s31, 1
          %s282 = scalar_lea.sflag [#allocation3], %s281
          %s283 = sand.u32 %s31, 1
          %s284 = smul.addr %s283, 224
          %s285 = scalar_lea.vmem [#allocation2], %s284
          %s286 = smul.u32 4, %s21
          %288 = vsyncadd %s282, 0
          %s289 = smul.addr %s286, 7
          %s290 = smul.addr %s289, 8
          %s291 = scalar_lea.hbm %s0, %s290
          %s292 = sshll.u32 %s291, 4
          %s293 = int_to_ptr.hbm [resolvable:$true] %s292
          %s294 = sshll.u32 %s285, 4
          %s295 = int_to_ptr.vmem [resolvable:$true] %s294
          %300 = dma.hbm_to_vmem [thread:$0]  %s293, 3584, %s295, %s282, 896, 896, 56
        $region44: #{tpu_custom_call.1} parent=39 // pred_fallthru
          _
      $region40: #{tpu_custom_call.1} parent=5 // pred_fallthru
        _
      %p301 = scmp.le.s32.totalorder 1, %s21
      %p302 = scmp.lt.s32.totalorder %s21, 3
      %p303 = pnand %p301, %p302
      %p304 = pneg %p303
      // Predicated region
      $region45: #{tpu_custom_call.1} parent=5 // pred_check
        _
      $region46: #{tpu_custom_call.1} parent=5 // pred_check_branch
        %306 = sbr.rel (%p303) target = $region48
      $region47: #{tpu_custom_call.1} parent=5 // pred_region
        %s307 = ssub.s32 %s21, 1
        %s308 = sand.u32 %s34, 1
        %s309 = scalar_lea.sflag [#allocation3], %s308
        %s310 = sand.u32 %s34, 1
        %s311 = smul.addr %s310, 224
        %s312 = scalar_lea.vmem [#allocation2], %s311
        // Predicated region
        $region49: #{tpu_custom_call.1} parent=47 // pred_check
          %p313 = pneg %p47
        $region50: #{tpu_custom_call.1} parent=47 // pred_check_branch
          %315 = sbr.rel (%p313) target = $region52
        $region51: #{tpu_custom_call.1} parent=47 // pred_region
          %317 = dma.done %s309, 3584
        $region52: #{tpu_custom_call.1} parent=47 // pred_fallthru
          _
        // Predicated region
        $region53: #{tpu_custom_call.1} parent=47 // pred_check
          %p318 = pneg %p68
        $region54: #{tpu_custom_call.1} parent=47 // pred_check_branch
          %320 = sbr.rel (%p318) target = $region56
        $region55: #{tpu_custom_call.1} parent=47 // pred_region
          %322 = dma.done [#allocation6], 28672
        $region56: #{tpu_custom_call.1} parent=47 // pred_fallthru
          _
        // Predicated region
        $region57: #{tpu_custom_call.1} parent=47 // pred_check
          %p323 = pneg %p89
        $region58: #{tpu_custom_call.1} parent=47 // pred_check_branch
          %325 = sbr.rel (%p323) target = $region60
        $region59: #{tpu_custom_call.1} parent=47 // pred_region
          %327 = dma.done [#allocation6], 32
        $region60: #{tpu_custom_call.1} parent=47 // pred_fallthru
          _
        // Predicated region
        $region61: #{tpu_custom_call.1} parent=47 // pred_check
          %p328 = pneg %p110
        $region62: #{tpu_custom_call.1} parent=47 // pred_check_branch
          %330 = sbr.rel (%p328) target = $region64
        $region63: #{tpu_custom_call.1} parent=47 // pred_region
          %332 = dma.done [#allocation9], 8192
        $region64: #{tpu_custom_call.1} parent=47 // pred_fallthru
          _
        // Predicated region
        $region65: #{tpu_custom_call.1} parent=47 // pred_check
          %p333 = pneg %p152
        $region66: #{tpu_custom_call.1} parent=47 // pred_check_branch
          %335 = sbr.rel (%p333) target = $region68
        $region67: #{tpu_custom_call.1} parent=47 // pred_region
          %337 = dma.done [#allocation9], 4096
        $region68: #{tpu_custom_call.1} parent=47 // pred_fallthru
          _
        %s338 = sand.u32 %s34, 1
        %s339 = scalar_lea.sflag [#allocation3], %s338
        %s340 = sand.u32 %s34, 1
        %s341 = smul.addr %s340, 224
        %s342 = scalar_lea.vmem [#allocation2], %s341
        %p343 = pneg %p47
        %p344 = pneg %p44
        %p345 = pneg %p68
        %p346 = pneg %p65
        %p347 = pneg %p89
        %p348 = pneg %p86
        %p349 = pneg %p110
        %p350 = pneg %p107
        %p351 = pneg %p131
        %p352 = pneg %p128
        %p353 = pneg %p152
        %p354 = pneg %p149
        %p355 = pneg %p173
        %p356 = pneg %p170
        %p357 = pneg %p199
        %p358 = pneg %p196
        %s359 = sand.u32 %s186, 1
        %s360 = scalar_lea.sflag [#allocation4], %s359
        %s361 = sand.u32 %s186, 1
        %s362 = smul.addr %s361, 32
        %s363 = scalar_lea.vmem [#allocation11], %s362
        %s364 = smul.u32 4, %s26
        %s365 = smul.u32 4, %s26
        %v366 = vld [vmem:[%s312] sm:$0xff]
        %v367 = vld [vmem:[%s312 + $0x8] sm:$0xff]
        %v368 = vld [vmem:[%s312 + $0x10] sm:$0xff]
        %v369 = vld [vmem:[%s312 + $0x18] sm:$0xff]
        %v370 = vld [vmem:[%s312 + $0x20] sm:$0xff]
        %v371 = vld [vmem:[%s312 + $0x28] sm:$0xff]
        %v372 = vld [vmem:[%s312 + $0x30] sm:$0xff]
        %v373 = vld [vmem:[%s312 + $0x38] sm:$0xff]
        %v374 = vld [vmem:[%s312 + $0x40] sm:$0xff]
        %v375 = vld [vmem:[%s312 + $0x48] sm:$0xff]
        %v376 = vld [vmem:[%s312 + $0x50] sm:$0xff]
        %v377 = vld [vmem:[%s312 + $0x58] sm:$0xff]
        %v378 = vld [vmem:[%s312 + $0x60] sm:$0xff]
        %v379 = vld [vmem:[%s312 + $0x68] sm:$0xff]
        %v380 = vld [vmem:[%s312 + $0x70] sm:$0xff]
        %v381 = vld [vmem:[%s312 + $0x78] sm:$0xff]
        %v382 = vld [vmem:[%s312 + $0x80] sm:$0xff]
        %v383 = vld [vmem:[%s312 + $0x88] sm:$0xff]
        %v384 = vld [vmem:[%s312 + $0x90] sm:$0xff]
        %v385 = vld [vmem:[%s312 + $0x98] sm:$0xff]
        %v386 = vld [vmem:[%s312 + $0xa0] sm:$0xff]
        %v387 = vld [vmem:[%s312 + $0xa8] sm:$0xff]
        %v388 = vld [vmem:[%s312 + $0xb0] sm:$0xff]
        %v389 = vld [vmem:[%s312 + $0xb8] sm:$0xff]
        %v390 = vld [vmem:[%s312 + $0xc0] sm:$0xff]
        %v391 = vld [vmem:[%s312 + $0xc8] sm:$0xff]
        %v392 = vld [vmem:[%s312 + $0xd0] sm:$0xff]
        %v393 = vld [vmem:[%s312 + $0xd8] sm:$0xff]
        %v394 = vld [vmem:[#allocation5] sm:$0xff]
        %v395 = vld [vmem:[#allocation5 + $0x8] sm:$0xff]
        %v396 = vld [vmem:[#allocation5 + $0x10] sm:$0xff]
        %v397 = vld [vmem:[#allocation5 + $0x18] sm:$0xff]
        %v398 = vld [vmem:[#allocation5 + $0x20] sm:$0xff]
        %v399 = vld [vmem:[#allocation5 + $0x28] sm:$0xff]
        %v400 = vld [vmem:[#allocation5 + $0x30] sm:$0xff]
        %v401 = vld [vmem:[#allocation5 + $0x38] sm:$0xff]
        %v402 = vld [vmem:[#allocation5 + $0x40] sm:$0xff]
        %v403 = vld [vmem:[#allocation5 + $0x48] sm:$0xff]
        %v404 = vld [vmem:[#allocation5 + $0x50] sm:$0xff]
        %v405 = vld [vmem:[#allocation5 + $0x58] sm:$0xff]
        %v406 = vld [vmem:[#allocation5 + $0x60] sm:$0xff]
        %v407 = vld [vmem:[#allocation5 + $0x68] sm:$0xff]
        %v408 = vld [vmem:[#allocation5 + $0x70] sm:$0xff]
        %v409 = vld [vmem:[#allocation5 + $0x78] sm:$0xff]
        %v410 = vld [vmem:[#allocation5 + $0x80] sm:$0xff]
        %v411 = vld [vmem:[#allocation5 + $0x88] sm:$0xff]
        %v412 = vld [vmem:[#allocation5 + $0x90] sm:$0xff]
        %v413 = vld [vmem:[#allocation5 + $0x98] sm:$0xff]
        %v414 = vld [vmem:[#allocation5 + $0xa0] sm:$0xff]
        %v415 = vld [vmem:[#allocation5 + $0xa8] sm:$0xff]
        %v416 = vld [vmem:[#allocation5 + $0xb0] sm:$0xff]
        %v417 = vld [vmem:[#allocation5 + $0xb8] sm:$0xff]
        %v418 = vld [vmem:[#allocation5 + $0xc0] sm:$0xff]
        %v419 = vld [vmem:[#allocation5 + $0xc8] sm:$0xff]
        %v420 = vld [vmem:[#allocation5 + $0xd0] sm:$0xff]
        %v421 = vld [vmem:[#allocation5 + $0xd8] sm:$0xff]
        %v422 = vld [vmem:[#allocation5 + $0xe0] sm:$0xff]
        %v423 = vld [vmem:[#allocation5 + $0xe8] sm:$0xff]
        %v424 = vld [vmem:[#allocation5 + $0xf0] sm:$0xff]
        %v425 = vld [vmem:[#allocation5 + $0xf8] sm:$0xff]
        %v426 = vld [vmem:[#allocation5 + $0x100] sm:$0xff]
        %v427 = vld [vmem:[#allocation5 + $0x108] sm:$0xff]
        %v428 = vld [vmem:[#allocation5 + $0x110] sm:$0xff]
        %v429 = vld [vmem:[#allocation5 + $0x118] sm:$0xff]
        %v430 = vld [vmem:[#allocation5 + $0x120] sm:$0xff]
        %v431 = vld [vmem:[#allocation5 + $0x128] sm:$0xff]
        %v432 = vld [vmem:[#allocation5 + $0x130] sm:$0xff]
        %v433 = vld [vmem:[#allocation5 + $0x138] sm:$0xff]
        %v434 = vld [vmem:[#allocation5 + $0x140] sm:$0xff]
        %v435 = vld [vmem:[#allocation5 + $0x148] sm:$0xff]
        %v436 = vld [vmem:[#allocation5 + $0x150] sm:$0xff]
        %v437 = vld [vmem:[#allocation5 + $0x158] sm:$0xff]
        %v438 = vld [vmem:[#allocation5 + $0x160] sm:$0xff]
        %v439 = vld [vmem:[#allocation5 + $0x168] sm:$0xff]
        %v440 = vld [vmem:[#allocation5 + $0x170] sm:$0xff]
        %v441 = vld [vmem:[#allocation5 + $0x178] sm:$0xff]
        %v442 = vld [vmem:[#allocation5 + $0x180] sm:$0xff]
        %v443 = vld [vmem:[#allocation5 + $0x188] sm:$0xff]
        %v444 = vld [vmem:[#allocation5 + $0x190] sm:$0xff]
        %v445 = vld [vmem:[#allocation5 + $0x198] sm:$0xff]
        %v446 = vld [vmem:[#allocation5 + $0x1a0] sm:$0xff]
        %v447 = vld [vmem:[#allocation5 + $0x1a8] sm:$0xff]
        %v448 = vld [vmem:[#allocation5 + $0x1b0] sm:$0xff]
        %v449 = vld [vmem:[#allocation5 + $0x1b8] sm:$0xff]
        %v450 = vld [vmem:[#allocation5 + $0x1c0] sm:$0xff]
        %v451 = vld [vmem:[#allocation5 + $0x1c8] sm:$0xff]
        %v452 = vld [vmem:[#allocation5 + $0x1d0] sm:$0xff]
        %v453 = vld [vmem:[#allocation5 + $0x1d8] sm:$0xff]
        %v454 = vld [vmem:[#allocation5 + $0x1e0] sm:$0xff]
        %v455 = vld [vmem:[#allocation5 + $0x1e8] sm:$0xff]
        %v456 = vld [vmem:[#allocation5 + $0x1f0] sm:$0xff]
        %v457 = vld [vmem:[#allocation5 + $0x1f8] sm:$0xff]
        %v458 = vld [vmem:[#allocation5 + $0x200] sm:$0xff]
        %v459 = vld [vmem:[#allocation5 + $0x208] sm:$0xff]
        %v460 = vld [vmem:[#allocation5 + $0x210] sm:$0xff]
        %v461 = vld [vmem:[#allocation5 + $0x218] sm:$0xff]
        %v462 = vld [vmem:[#allocation5 + $0x220] sm:$0xff]
        %v463 = vld [vmem:[#allocation5 + $0x228] sm:$0xff]
        %v464 = vld [vmem:[#allocation5 + $0x230] sm:$0xff]
        %v465 = vld [vmem:[#allocation5 + $0x238] sm:$0xff]
        %v466 = vld [vmem:[#allocation5 + $0x240] sm:$0xff]
        %v467 = vld [vmem:[#allocation5 + $0x248] sm:$0xff]
        %v468 = vld [vmem:[#allocation5 + $0x250] sm:$0xff]
        %v469 = vld [vmem:[#allocation5 + $0x258] sm:$0xff]
        %v470 = vld [vmem:[#allocation5 + $0x260] sm:$0xff]
        %v471 = vld [vmem:[#allocation5 + $0x268] sm:$0xff]
        %v472 = vld [vmem:[#allocation5 + $0x270] sm:$0xff]
        %v473 = vld [vmem:[#allocation5 + $0x278] sm:$0xff]
        %v474 = vld [vmem:[#allocation5 + $0x280] sm:$0xff]
        %v475 = vld [vmem:[#allocation5 + $0x288] sm:$0xff]
        %v476 = vld [vmem:[#allocation5 + $0x290] sm:$0xff]
        %v477 = vld [vmem:[#allocation5 + $0x298] sm:$0xff]
        %v478 = vld [vmem:[#allocation5 + $0x2a0] sm:$0xff]
        %v479 = vld [vmem:[#allocation5 + $0x2a8] sm:$0xff]
        %v480 = vld [vmem:[#allocation5 + $0x2b0] sm:$0xff]
        %v481 = vld [vmem:[#allocation5 + $0x2b8] sm:$0xff]
        %v482 = vld [vmem:[#allocation5 + $0x2c0] sm:$0xff]
        %v483 = vld [vmem:[#allocation5 + $0x2c8] sm:$0xff]
        %v484 = vld [vmem:[#allocation5 + $0x2d0] sm:$0xff]
        %v485 = vld [vmem:[#allocation5 + $0x2d8] sm:$0xff]
        %v486 = vld [vmem:[#allocation5 + $0x2e0] sm:$0xff]
        %v487 = vld [vmem:[#allocation5 + $0x2e8] sm:$0xff]
        %v488 = vld [vmem:[#allocation5 + $0x2f0] sm:$0xff]
        %v489 = vld [vmem:[#allocation5 + $0x2f8] sm:$0xff]
        %v490 = vld [vmem:[#allocation5 + $0x300] sm:$0xff]
        %v491 = vld [vmem:[#allocation5 + $0x308] sm:$0xff]
        %v492 = vld [vmem:[#allocation5 + $0x310] sm:$0xff]
        %v493 = vld [vmem:[#allocation5 + $0x318] sm:$0xff]
        %v494 = vld [vmem:[#allocation5 + $0x320] sm:$0xff]
        %v495 = vld [vmem:[#allocation5 + $0x328] sm:$0xff]
        %v496 = vld [vmem:[#allocation5 + $0x330] sm:$0xff]
        %v497 = vld [vmem:[#allocation5 + $0x338] sm:$0xff]
        %v498 = vld [vmem:[#allocation5 + $0x340] sm:$0xff]
        %v499 = vld [vmem:[#allocation5 + $0x348] sm:$0xff]
        %v500 = vld [vmem:[#allocation5 + $0x350] sm:$0xff]
        %v501 = vld [vmem:[#allocation5 + $0x358] sm:$0xff]
        %v502 = vld [vmem:[#allocation5 + $0x360] sm:$0xff]
        %v503 = vld [vmem:[#allocation5 + $0x368] sm:$0xff]
        %v504 = vld [vmem:[#allocation5 + $0x370] sm:$0xff]
        %v505 = vld [vmem:[#allocation5 + $0x378] sm:$0xff]
        %v506 = vld [vmem:[#allocation5 + $0x380] sm:$0xff]
        %v507 = vld [vmem:[#allocation5 + $0x388] sm:$0xff]
        %v508 = vld [vmem:[#allocation5 + $0x390] sm:$0xff]
        %v509 = vld [vmem:[#allocation5 + $0x398] sm:$0xff]
        %v510 = vld [vmem:[#allocation5 + $0x3a0] sm:$0xff]
        %v511 = vld [vmem:[#allocation5 + $0x3a8] sm:$0xff]
        %v512 = vld [vmem:[#allocation5 + $0x3b0] sm:$0xff]
        %v513 = vld [vmem:[#allocation5 + $0x3b8] sm:$0xff]
        %v514 = vld [vmem:[#allocation5 + $0x3c0] sm:$0xff]
        %v515 = vld [vmem:[#allocation5 + $0x3c8] sm:$0xff]
        %v516 = vld [vmem:[#allocation5 + $0x3d0] sm:$0xff]
        %v517 = vld [vmem:[#allocation5 + $0x3d8] sm:$0xff]
        %v518 = vld [vmem:[#allocation5 + $0x3e0] sm:$0xff]
        %v519 = vld [vmem:[#allocation5 + $0x3e8] sm:$0xff]
        %v520 = vld [vmem:[#allocation5 + $0x3f0] sm:$0xff]
        %v521 = vld [vmem:[#allocation5 + $0x3f8] sm:$0xff]
        %v522 = vld [vmem:[#allocation5 + $0x400] sm:$0xff]
        %v523 = vld [vmem:[#allocation5 + $0x408] sm:$0xff]
        %v524 = vld [vmem:[#allocation5 + $0x410] sm:$0xff]
        %v525 = vld [vmem:[#allocation5 + $0x418] sm:$0xff]
        %v526 = vld [vmem:[#allocation5 + $0x420] sm:$0xff]
        %v527 = vld [vmem:[#allocation5 + $0x428] sm:$0xff]
        %v528 = vld [vmem:[#allocation5 + $0x430] sm:$0xff]
        %v529 = vld [vmem:[#allocation5 + $0x438] sm:$0xff]
        %v530 = vld [vmem:[#allocation5 + $0x440] sm:$0xff]
        %v531 = vld [vmem:[#allocation5 + $0x448] sm:$0xff]
        %v532 = vld [vmem:[#allocation5 + $0x450] sm:$0xff]
        %v533 = vld [vmem:[#allocation5 + $0x458] sm:$0xff]
        %v534 = vld [vmem:[#allocation5 + $0x460] sm:$0xff]
        %v535 = vld [vmem:[#allocation5 + $0x468] sm:$0xff]
        %v536 = vld [vmem:[#allocation5 + $0x470] sm:$0xff]
        %v537 = vld [vmem:[#allocation5 + $0x478] sm:$0xff]
        %v538 = vld [vmem:[#allocation5 + $0x480] sm:$0xff]
        %v539 = vld [vmem:[#allocation5 + $0x488] sm:$0xff]
        %v540 = vld [vmem:[#allocation5 + $0x490] sm:$0xff]
        %v541 = vld [vmem:[#allocation5 + $0x498] sm:$0xff]
        %v542 = vld [vmem:[#allocation5 + $0x4a0] sm:$0xff]
        %v543 = vld [vmem:[#allocation5 + $0x4a8] sm:$0xff]
        %v544 = vld [vmem:[#allocation5 + $0x4b0] sm:$0xff]
        %v545 = vld [vmem:[#allocation5 + $0x4b8] sm:$0xff]
        %v546 = vld [vmem:[#allocation5 + $0x4c0] sm:$0xff]
        %v547 = vld [vmem:[#allocation5 + $0x4c8] sm:$0xff]
        %v548 = vld [vmem:[#allocation5 + $0x4d0] sm:$0xff]
        %v549 = vld [vmem:[#allocation5 + $0x4d8] sm:$0xff]
        %v550 = vld [vmem:[#allocation5 + $0x4e0] sm:$0xff]
        %v551 = vld [vmem:[#allocation5 + $0x4e8] sm:$0xff]
        %v552 = vld [vmem:[#allocation5 + $0x4f0] sm:$0xff]
        %v553 = vld [vmem:[#allocation5 + $0x4f8] sm:$0xff]
        %v554 = vld [vmem:[#allocation5 + $0x500] sm:$0xff]
        %v555 = vld [vmem:[#allocation5 + $0x508] sm:$0xff]
        %v556 = vld [vmem:[#allocation5 + $0x510] sm:$0xff]
        %v557 = vld [vmem:[#allocation5 + $0x518] sm:$0xff]
        %v558 = vld [vmem:[#allocation5 + $0x520] sm:$0xff]
        %v559 = vld [vmem:[#allocation5 + $0x528] sm:$0xff]
        %v560 = vld [vmem:[#allocation5 + $0x530] sm:$0xff]
        %v561 = vld [vmem:[#allocation5 + $0x538] sm:$0xff]
        %v562 = vld [vmem:[#allocation5 + $0x540] sm:$0xff]
        %v563 = vld [vmem:[#allocation5 + $0x548] sm:$0xff]
        %v564 = vld [vmem:[#allocation5 + $0x550] sm:$0xff]
        %v565 = vld [vmem:[#allocation5 + $0x558] sm:$0xff]
        %v566 = vld [vmem:[#allocation5 + $0x560] sm:$0xff]
        %v567 = vld [vmem:[#allocation5 + $0x568] sm:$0xff]
        %v568 = vld [vmem:[#allocation5 + $0x570] sm:$0xff]
        %v569 = vld [vmem:[#allocation5 + $0x578] sm:$0xff]
        %v570 = vld [vmem:[#allocation5 + $0x580] sm:$0xff]
        %v571 = vld [vmem:[#allocation5 + $0x588] sm:$0xff]
        %v572 = vld [vmem:[#allocation5 + $0x590] sm:$0xff]
        %v573 = vld [vmem:[#allocation5 + $0x598] sm:$0xff]
        %v574 = vld [vmem:[#allocation5 + $0x5a0] sm:$0xff]
        %v575 = vld [vmem:[#allocation5 + $0x5a8] sm:$0xff]
        %v576 = vld [vmem:[#allocation5 + $0x5b0] sm:$0xff]
        %v577 = vld [vmem:[#allocation5 + $0x5b8] sm:$0xff]
        %v578 = vld [vmem:[#allocation5 + $0x5c0] sm:$0xff]
        %v579 = vld [vmem:[#allocation5 + $0x5c8] sm:$0xff]
        %v580 = vld [vmem:[#allocation5 + $0x5d0] sm:$0xff]
        %v581 = vld [vmem:[#allocation5 + $0x5d8] sm:$0xff]
        %v582 = vld [vmem:[#allocation5 + $0x5e0] sm:$0xff]
        %v583 = vld [vmem:[#allocation5 + $0x5e8] sm:$0xff]
        %v584 = vld [vmem:[#allocation5 + $0x5f0] sm:$0xff]
        %v585 = vld [vmem:[#allocation5 + $0x5f8] sm:$0xff]
        %v586 = vld [vmem:[#allocation5 + $0x600] sm:$0xff]
        %v587 = vld [vmem:[#allocation5 + $0x608] sm:$0xff]
        %v588 = vld [vmem:[#allocation5 + $0x610] sm:$0xff]
        %v589 = vld [vmem:[#allocation5 + $0x618] sm:$0xff]
        %v590 = vld [vmem:[#allocation5 + $0x620] sm:$0xff]
        %v591 = vld [vmem:[#allocation5 + $0x628] sm:$0xff]
        %v592 = vld [vmem:[#allocation5 + $0x630] sm:$0xff]
        %v593 = vld [vmem:[#allocation5 + $0x638] sm:$0xff]
        %v594 = vld [vmem:[#allocation5 + $0x640] sm:$0xff]
        %v595 = vld [vmem:[#allocation5 + $0x648] sm:$0xff]
        %v596 = vld [vmem:[#allocation5 + $0x650] sm:$0xff]
        %v597 = vld [vmem:[#allocation5 + $0x658] sm:$0xff]
        %v598 = vld [vmem:[#allocation5 + $0x660] sm:$0xff]
        %v599 = vld [vmem:[#allocation5 + $0x668] sm:$0xff]
        %v600 = vld [vmem:[#allocation5 + $0x670] sm:$0xff]
        %v601 = vld [vmem:[#allocation5 + $0x678] sm:$0xff]
        %v602 = vld [vmem:[#allocation5 + $0x680] sm:$0xff]
        %v603 = vld [vmem:[#allocation5 + $0x688] sm:$0xff]
        %v604 = vld [vmem:[#allocation5 + $0x690] sm:$0xff]
        %v605 = vld [vmem:[#allocation5 + $0x698] sm:$0xff]
        %v606 = vld [vmem:[#allocation5 + $0x6a0] sm:$0xff]
        %v607 = vld [vmem:[#allocation5 + $0x6a8] sm:$0xff]
        %v608 = vld [vmem:[#allocation5 + $0x6b0] sm:$0xff]
        %v609 = vld [vmem:[#allocation5 + $0x6b8] sm:$0xff]
        %v610 = vld [vmem:[#allocation5 + $0x6c0] sm:$0xff]
        %v611 = vld [vmem:[#allocation5 + $0x6c8] sm:$0xff]
        %v612 = vld [vmem:[#allocation5 + $0x6d0] sm:$0xff]
        %v613 = vld [vmem:[#allocation5 + $0x6d8] sm:$0xff]
        %v614 = vld [vmem:[#allocation5 + $0x6e0] sm:$0xff]
        %v615 = vld [vmem:[#allocation5 + $0x6e8] sm:$0xff]
        %v616 = vld [vmem:[#allocation5 + $0x6f0] sm:$0xff]
        %v617 = vld [vmem:[#allocation5 + $0x6f8] sm:$0xff]
        %v618 = vld [vmem:[#allocation7] sm:$0x3]
        %v620 = vperm.slane %v618, 0
        %v621 = vperm.slane %v618, 1
        %624 = vmatpush.msra.mxu0 %v424
        %625 = vmatpush.msra.mxu0 %v422
        %626 = vmatpush.msra.mxu0 %v420
        %627 = vmatpush.msra.mxu0 %v418
        %628 = vmatpush.msra.mxu0 %v416
        %629 = vmatpush.msra.mxu0 %v414
        %630 = vmatpush.msra.mxu0 %v412
        %631 = vmatpush.msra.mxu0 %v410
        %632 = vmatpush.msra.mxu0 %v408
        %633 = vmatpush.msra.mxu0 %v406
        %634 = vmatpush.msra.mxu0 %v404
        %635 = vmatpush.msra.mxu0 %v402
        %636 = vmatpush.msra.mxu0 %v400
        %637 = vmatpush.msra.mxu0 %v398
        %638 = vmatpush.msra.mxu0 %v396
        %639 = vmatpush.msra.mxu0 %v394
        %640 = vmatmul.f32.gmra.mxu0 %v366
        %v641 = vpop.f32.mrf.mxu0
        %v642 = vadd.f32 %v620, %v641
        %643 = vmatmul.f32.gmra.mxu0 %v373
        %v644 = vpop.f32.mrf.mxu0
        %v645 = vadd.f32 %v620, %v644
        %646 = vmatmul.f32.gmra.mxu0 %v380
        %v647 = vpop.f32.mrf.mxu0
        %v648 = vadd.f32 %v620, %v647
        %649 = vmatmul.f32.gmra.mxu0 %v387
        %v650 = vpop.f32.mrf.mxu0
        %v651 = vadd.f32 %v620, %v650
        %652 = vdwg.mxu0
        %653 = vmatpush.msra.mxu0 %v456
        %654 = vmatpush.msra.mxu0 %v454
        %655 = vmatpush.msra.mxu0 %v452
        %656 = vmatpush.msra.mxu0 %v450
        %657 = vmatpush.msra.mxu0 %v448
        %658 = vmatpush.msra.mxu0 %v446
        %659 = vmatpush.msra.mxu0 %v444
        %660 = vmatpush.msra.mxu0 %v442
        %661 = vmatpush.msra.mxu0 %v440
        %662 = vmatpush.msra.mxu0 %v438
        %663 = vmatpush.msra.mxu0 %v436
        %664 = vmatpush.msra.mxu0 %v434
        %665 = vmatpush.msra.mxu0 %v432
        %666 = vmatpush.msra.mxu0 %v430
        %667 = vmatpush.msra.mxu0 %v428
        %668 = vmatpush.msra.mxu0 %v426
        %669 = vmatmul.f32.gmra.mxu0 %v367
        %v670 = vpop.f32.mrf.mxu0
        %v671 = vadd.f32 %v642, %v670
        %672 = vmatmul.f32.gmra.mxu0 %v374
        %v673 = vpop.f32.mrf.mxu0
        %v674 = vadd.f32 %v645, %v673
        %675 = vmatmul.f32.gmra.mxu0 %v381
        %v676 = vpop.f32.mrf.mxu0
        %v677 = vadd.f32 %v648, %v676
        %678 = vmatmul.f32.gmra.mxu0 %v388
        %v679 = vpop.f32.mrf.mxu0
        %v680 = vadd.f32 %v651, %v679
        %681 = vdwg.mxu0
        %682 = vmatpush.msra.mxu0 %v488
        %683 = vmatpush.msra.mxu0 %v486
        %684 = vmatpush.msra.mxu0 %v484
        %685 = vmatpush.msra.mxu0 %v482
        %686 = vmatpush.msra.mxu0 %v480
        %687 = vmatpush.msra.mxu0 %v478
        %688 = vmatpush.msra.mxu0 %v476
        %689 = vmatpush.msra.mxu0 %v474
        %690 = vmatpush.msra.mxu0 %v472
        %691 = vmatpush.msra.mxu0 %v470
        %692 = vmatpush.msra.mxu0 %v468
        %693 = vmatpush.msra.mxu0 %v466
        %694 = vmatpush.msra.mxu0 %v464
        %695 = vmatpush.msra.mxu0 %v462
        %696 = vmatpush.msra.mxu0 %v460
        %697 = vmatpush.msra.mxu0 %v458
        %698 = vmatmul.f32.gmra.mxu0 %v368
        %v699 = vpop.f32.mrf.mxu0
        %v700 = vadd.f32 %v671, %v699
        %701 = vmatmul.f32.gmra.mxu0 %v375
        %v702 = vpop.f32.mrf.mxu0
        %v703 = vadd.f32 %v674, %v702
        %704 = vmatmul.f32.gmra.mxu0 %v382
        %v705 = vpop.f32.mrf.mxu0
        %v706 = vadd.f32 %v677, %v705
        %707 = vmatmul.f32.gmra.mxu0 %v389
        %v708 = vpop.f32.mrf.mxu0
        %v709 = vadd.f32 %v680, %v708
        %710 = vdwg.mxu0
        %711 = vmatpush.msra.mxu0 %v520
        %712 = vmatpush.msra.mxu0 %v518
        %713 = vmatpush.msra.mxu0 %v516
        %714 = vmatpush.msra.mxu0 %v514
        %715 = vmatpush.msra.mxu0 %v512
        %716 = vmatpush.msra.mxu0 %v510
        %717 = vmatpush.msra.mxu0 %v508
        %718 = vmatpush.msra.mxu0 %v506
        %719 = vmatpush.msra.mxu0 %v504
        %720 = vmatpush.msra.mxu0 %v502
        %721 = vmatpush.msra.mxu0 %v500
        %722 = vmatpush.msra.mxu0 %v498
        %723 = vmatpush.msra.mxu0 %v496
        %724 = vmatpush.msra.mxu0 %v494
        %725 = vmatpush.msra.mxu0 %v492
        %726 = vmatpush.msra.mxu0 %v490
        %727 = vmatmul.f32.gmra.mxu0 %v369
        %v728 = vpop.f32.mrf.mxu0
        %v729 = vadd.f32 %v700, %v728
        %730 = vmatmul.f32.gmra.mxu0 %v376
        %v731 = vpop.f32.mrf.mxu0
        %v732 = vadd.f32 %v703, %v731
        %733 = vmatmul.f32.gmra.mxu0 %v383
        %v734 = vpop.f32.mrf.mxu0
        %v735 = vadd.f32 %v706, %v734
        %736 = vmatmul.f32.gmra.mxu0 %v390
        %v737 = vpop.f32.mrf.mxu0
        %v738 = vadd.f32 %v709, %v737
        %739 = vdwg.mxu0
        %740 = vmatpush.msra.mxu0 %v552
        %741 = vmatpush.msra.mxu0 %v550
        %742 = vmatpush.msra.mxu0 %v548
        %743 = vmatpush.msra.mxu0 %v546
        %744 = vmatpush.msra.mxu0 %v544
        %745 = vmatpush.msra.mxu0 %v542
        %746 = vmatpush.msra.mxu0 %v540
        %747 = vmatpush.msra.mxu0 %v538
        %748 = vmatpush.msra.mxu0 %v536
        %749 = vmatpush.msra.mxu0 %v534
        %750 = vmatpush.msra.mxu0 %v532
        %751 = vmatpush.msra.mxu0 %v530
        %752 = vmatpush.msra.mxu0 %v528
        %753 = vmatpush.msra.mxu0 %v526
        %754 = vmatpush.msra.mxu0 %v524
        %755 = vmatpush.msra.mxu0 %v522
        %756 = vmatmul.f32.gmra.mxu0 %v370
        %v757 = vpop.f32.mrf.mxu0
        %v758 = vadd.f32 %v729, %v757
        %759 = vmatmul.f32.gmra.mxu0 %v377
        %v760 = vpop.f32.mrf.mxu0
        %v761 = vadd.f32 %v732, %v760
        %762 = vmatmul.f32.gmra.mxu0 %v384
        %v763 = vpop.f32.mrf.mxu0
        %v764 = vadd.f32 %v735, %v763
        %765 = vmatmul.f32.gmra.mxu0 %v391
        %v766 = vpop.f32.mrf.mxu0
        %v767 = vadd.f32 %v738, %v766
        %768 = vdwg.mxu0
        %769 = vmatpush.msra.mxu0 %v584
        %770 = vmatpush.msra.mxu0 %v582
        %771 = vmatpush.msra.mxu0 %v580
        %772 = vmatpush.msra.mxu0 %v578
        %773 = vmatpush.msra.mxu0 %v576
        %774 = vmatpush.msra.mxu0 %v574
        %775 = vmatpush.msra.mxu0 %v572
        %776 = vmatpush.msra.mxu0 %v570
        %777 = vmatpush.msra.mxu0 %v568
        %778 = vmatpush.msra.mxu0 %v566
        %779 = vmatpush.msra.mxu0 %v564
        %780 = vmatpush.msra.mxu0 %v562
        %781 = vmatpush.msra.mxu0 %v560
        %782 = vmatpush.msra.mxu0 %v558
        %783 = vmatpush.msra.mxu0 %v556
        %784 = vmatpush.msra.mxu0 %v554
        %785 = vmatmul.f32.gmra.mxu0 %v371
        %v786 = vpop.f32.mrf.mxu0
        %v787 = vadd.f32 %v758, %v786
        %788 = vmatmul.f32.gmra.mxu0 %v378
        %v789 = vpop.f32.mrf.mxu0
        %v790 = vadd.f32 %v761, %v789
        %791 = vmatmul.f32.gmra.mxu0 %v385
        %v792 = vpop.f32.mrf.mxu0
        %v793 = vadd.f32 %v764, %v792
        %794 = vmatmul.f32.gmra.mxu0 %v392
        %v795 = vpop.f32.mrf.mxu0
        %v796 = vadd.f32 %v767, %v795
        %797 = vdwg.mxu0
        %798 = vmatpush.msra.mxu0 %v616
        %799 = vmatpush.msra.mxu0 %v614
        %800 = vmatpush.msra.mxu0 %v612
        %801 = vmatpush.msra.mxu0 %v610
        %802 = vmatpush.msra.mxu0 %v608
        %803 = vmatpush.msra.mxu0 %v606
        %804 = vmatpush.msra.mxu0 %v604
        %805 = vmatpush.msra.mxu0 %v602
        %806 = vmatpush.msra.mxu0 %v600
        %807 = vmatpush.msra.mxu0 %v598
        %808 = vmatpush.msra.mxu0 %v596
        %809 = vmatpush.msra.mxu0 %v594
        %810 = vmatpush.msra.mxu0 %v592
        %811 = vmatpush.msra.mxu0 %v590
        %812 = vmatpush.msra.mxu0 %v588
        %813 = vmatpush.msra.mxu0 %v586
        %814 = vmatmul.f32.gmra.mxu0 %v372
        %v815 = vpop.f32.mrf.mxu0
        %v816 = vadd.f32 %v787, %v815
        %817 = vmatmul.f32.gmra.mxu0 %v379
        %v818 = vpop.f32.mrf.mxu0
        %v819 = vadd.f32 %v790, %v818
        %820 = vmatmul.f32.gmra.mxu0 %v386
        %v821 = vpop.f32.mrf.mxu0
        %v822 = vadd.f32 %v793, %v821
        %823 = vmatmul.f32.gmra.mxu0 %v393
        %v824 = vpop.f32.mrf.mxu0
        %v825 = vadd.f32 %v796, %v824
        %826 = vdwg.mxu0
        %827 = vmatpush.msra.mxu0 %v425
        %828 = vmatpush.msra.mxu0 %v423
        %829 = vmatpush.msra.mxu0 %v421
        %830 = vmatpush.msra.mxu0 %v419
        %831 = vmatpush.msra.mxu0 %v417
        %832 = vmatpush.msra.mxu0 %v415
        %833 = vmatpush.msra.mxu0 %v413
        %834 = vmatpush.msra.mxu0 %v411
        %835 = vmatpush.msra.mxu0 %v409
        %836 = vmatpush.msra.mxu0 %v407
        %837 = vmatpush.msra.mxu0 %v405
        %838 = vmatpush.msra.mxu0 %v403
        %839 = vmatpush.msra.mxu0 %v401
        %840 = vmatpush.msra.mxu0 %v399
        %841 = vmatpush.msra.mxu0 %v397
        %842 = vmatpush.msra.mxu0 %v395
        %843 = vmatmul.f32.gmra.mxu0 %v366
        %v844 = vpop.f32.mrf.mxu0
        %v845 = vadd.f32 %v621, %v844
        %846 = vmatmul.f32.gmra.mxu0 %v373
        %v847 = vpop.f32.mrf.mxu0
        %v848 = vadd.f32 %v621, %v847
        %849 = vmatmul.f32.gmra.mxu0 %v380
        %v850 = vpop.f32.mrf.mxu0
        %v851 = vadd.f32 %v621, %v850
        %852 = vmatmul.f32.gmra.mxu0 %v387
        %v853 = vpop.f32.mrf.mxu0
        %v854 = vadd.f32 %v621, %v853
        %855 = vdwg.mxu0
        %856 = vmatpush.msra.mxu0 %v457
        %857 = vmatpush.msra.mxu0 %v455
        %858 = vmatpush.msra.mxu0 %v453
        %859 = vmatpush.msra.mxu0 %v451
        %860 = vmatpush.msra.mxu0 %v449
        %861 = vmatpush.msra.mxu0 %v447
        %862 = vmatpush.msra.mxu0 %v445
        %863 = vmatpush.msra.mxu0 %v443
        %864 = vmatpush.msra.mxu0 %v441
        %865 = vmatpush.msra.mxu0 %v439
        %866 = vmatpush.msra.mxu0 %v437
        %867 = vmatpush.msra.mxu0 %v435
        %868 = vmatpush.msra.mxu0 %v433
        %869 = vmatpush.msra.mxu0 %v431
        %870 = vmatpush.msra.mxu0 %v429
        %871 = vmatpush.msra.mxu0 %v427
        %872 = vmatmul.f32.gmra.mxu0 %v367
        %v873 = vpop.f32.mrf.mxu0
        %v874 = vadd.f32 %v845, %v873
        %875 = vmatmul.f32.gmra.mxu0 %v374
        %v876 = vpop.f32.mrf.mxu0
        %v877 = vadd.f32 %v848, %v876
        %878 = vmatmul.f32.gmra.mxu0 %v381
        %v879 = vpop.f32.mrf.mxu0
        %v880 = vadd.f32 %v851, %v879
        %881 = vmatmul.f32.gmra.mxu0 %v388
        %v882 = vpop.f32.mrf.mxu0
        %v883 = vadd.f32 %v854, %v882
        %884 = vdwg.mxu0
        %885 = vmatpush.msra.mxu0 %v489
        %886 = vmatpush.msra.mxu0 %v487
        %887 = vmatpush.msra.mxu0 %v485
        %888 = vmatpush.msra.mxu0 %v483
        %889 = vmatpush.msra.mxu0 %v481
        %890 = vmatpush.msra.mxu0 %v479
        %891 = vmatpush.msra.mxu0 %v477
        %892 = vmatpush.msra.mxu0 %v475
        %893 = vmatpush.msra.mxu0 %v473
        %894 = vmatpush.msra.mxu0 %v471
        %895 = vmatpush.msra.mxu0 %v469
        %896 = vmatpush.msra.mxu0 %v467
        %897 = vmatpush.msra.mxu0 %v465
        %898 = vmatpush.msra.mxu0 %v463
        %899 = vmatpush.msra.mxu0 %v461
        %900 = vmatpush.msra.mxu0 %v459
        %901 = vmatmul.f32.gmra.mxu0 %v368
        %v902 = vpop.f32.mrf.mxu0
        %v903 = vadd.f32 %v874, %v902
        %904 = vmatmul.f32.gmra.mxu0 %v375
        %v905 = vpop.f32.mrf.mxu0
        %v906 = vadd.f32 %v877, %v905
        %907 = vmatmul.f32.gmra.mxu0 %v382
        %v908 = vpop.f32.mrf.mxu0
        %v909 = vadd.f32 %v880, %v908
        %910 = vmatmul.f32.gmra.mxu0 %v389
        %v911 = vpop.f32.mrf.mxu0
        %v912 = vadd.f32 %v883, %v911
        %913 = vdwg.mxu0
        %914 = vmatpush.msra.mxu0 %v521
        %915 = vmatpush.msra.mxu0 %v519
        %916 = vmatpush.msra.mxu0 %v517
        %917 = vmatpush.msra.mxu0 %v515
        %918 = vmatpush.msra.mxu0 %v513
        %919 = vmatpush.msra.mxu0 %v511
        %920 = vmatpush.msra.mxu0 %v509
        %921 = vmatpush.msra.mxu0 %v507
        %922 = vmatpush.msra.mxu0 %v505
        %923 = vmatpush.msra.mxu0 %v503
        %924 = vmatpush.msra.mxu0 %v501
        %925 = vmatpush.msra.mxu0 %v499
        %926 = vmatpush.msra.mxu0 %v497
        %927 = vmatpush.msra.mxu0 %v495
        %928 = vmatpush.msra.mxu0 %v493
        %929 = vmatpush.msra.mxu0 %v491
        %930 = vmatmul.f32.gmra.mxu0 %v369
        %v931 = vpop.f32.mrf.mxu0
        %v932 = vadd.f32 %v903, %v931
        %933 = vmatmul.f32.gmra.mxu0 %v376
        %v934 = vpop.f32.mrf.mxu0
        %v935 = vadd.f32 %v906, %v934
        %936 = vmatmul.f32.gmra.mxu0 %v383
        %v937 = vpop.f32.mrf.mxu0
        %v938 = vadd.f32 %v909, %v937
        %939 = vmatmul.f32.gmra.mxu0 %v390
        %v940 = vpop.f32.mrf.mxu0
        %v941 = vadd.f32 %v912, %v940
        %942 = vdwg.mxu0
        %943 = vmatpush.msra.mxu0 %v553
        %944 = vmatpush.msra.mxu0 %v551
        %945 = vmatpush.msra.mxu0 %v549
        %946 = vmatpush.msra.mxu0 %v547
        %947 = vmatpush.msra.mxu0 %v545
        %948 = vmatpush.msra.mxu0 %v543
        %949 = vmatpush.msra.mxu0 %v541
        %950 = vmatpush.msra.mxu0 %v539
        %951 = vmatpush.msra.mxu0 %v537
        %952 = vmatpush.msra.mxu0 %v535
        %953 = vmatpush.msra.mxu0 %v533
        %954 = vmatpush.msra.mxu0 %v531
        %955 = vmatpush.msra.mxu0 %v529
        %956 = vmatpush.msra.mxu0 %v527
        %957 = vmatpush.msra.mxu0 %v525
        %958 = vmatpush.msra.mxu0 %v523
        %959 = vmatmul.f32.gmra.mxu0 %v370
        %v960 = vpop.f32.mrf.mxu0
        %v961 = vadd.f32 %v932, %v960
        %962 = vmatmul.f32.gmra.mxu0 %v377
        %v963 = vpop.f32.mrf.mxu0
        %v964 = vadd.f32 %v935, %v963
        %965 = vmatmul.f32.gmra.mxu0 %v384
        %v966 = vpop.f32.mrf.mxu0
        %v967 = vadd.f32 %v938, %v966
        %968 = vmatmul.f32.gmra.mxu0 %v391
        %v969 = vpop.f32.mrf.mxu0
        %v970 = vadd.f32 %v941, %v969
        %971 = vdwg.mxu0
        %972 = vmatpush.msra.mxu0 %v585
        %973 = vmatpush.msra.mxu0 %v583
        %974 = vmatpush.msra.mxu0 %v581
        %975 = vmatpush.msra.mxu0 %v579
        %976 = vmatpush.msra.mxu0 %v577
        %977 = vmatpush.msra.mxu0 %v575
        %978 = vmatpush.msra.mxu0 %v573
        %979 = vmatpush.msra.mxu0 %v571
        %980 = vmatpush.msra.mxu0 %v569
        %981 = vmatpush.msra.mxu0 %v567
        %982 = vmatpush.msra.mxu0 %v565
        %983 = vmatpush.msra.mxu0 %v563
        %984 = vmatpush.msra.mxu0 %v561
        %985 = vmatpush.msra.mxu0 %v559
        %986 = vmatpush.msra.mxu0 %v557
        %987 = vmatpush.msra.mxu0 %v555
        %988 = vmatmul.f32.gmra.mxu0 %v371
        %v989 = vpop.f32.mrf.mxu0
        %v990 = vadd.f32 %v961, %v989
        %991 = vmatmul.f32.gmra.mxu0 %v378
        %v992 = vpop.f32.mrf.mxu0
        %v993 = vadd.f32 %v964, %v992
        %994 = vmatmul.f32.gmra.mxu0 %v385
        %v995 = vpop.f32.mrf.mxu0
        %v996 = vadd.f32 %v967, %v995
        %997 = vmatmul.f32.gmra.mxu0 %v392
        %v998 = vpop.f32.mrf.mxu0
        %v999 = vadd.f32 %v970, %v998
        %1000 = vdwg.mxu0
        %1001 = vmatpush.msra.mxu0 %v617
        %1002 = vmatpush.msra.mxu0 %v615
        %1003 = vmatpush.msra.mxu0 %v613
        %1004 = vmatpush.msra.mxu0 %v611
        %1005 = vmatpush.msra.mxu0 %v609
        %1006 = vmatpush.msra.mxu0 %v607
        %1007 = vmatpush.msra.mxu0 %v605
        %1008 = vmatpush.msra.mxu0 %v603
        %1009 = vmatpush.msra.mxu0 %v601
        %1010 = vmatpush.msra.mxu0 %v599
        %1011 = vmatpush.msra.mxu0 %v597
        %1012 = vmatpush.msra.mxu0 %v595
        %1013 = vmatpush.msra.mxu0 %v593
        %1014 = vmatpush.msra.mxu0 %v591
        %1015 = vmatpush.msra.mxu0 %v589
        %1016 = vmatpush.msra.mxu0 %v587
        %1017 = vmatmul.f32.gmra.mxu0 %v372
        %v1018 = vpop.f32.mrf.mxu0
        %v1019 = vadd.f32 %v990, %v1018
        %1020 = vmatmul.f32.gmra.mxu0 %v379
        %v1021 = vpop.f32.mrf.mxu0
        %v1022 = vadd.f32 %v993, %v1021
        %1023 = vmatmul.f32.gmra.mxu0 %v386
        %v1024 = vpop.f32.mrf.mxu0
        %v1025 = vadd.f32 %v996, %v1024
        %1026 = vmatmul.f32.gmra.mxu0 %v393
        %v1027 = vpop.f32.mrf.mxu0
        %v1028 = vadd.f32 %v999, %v1027
        %1029 = vdwg.mxu0
        %v1030 = vmax.f32 %v816, 0.0
        %v1031 = vmax.f32 %v1019, 0.0
        %v1032 = vmax.f32 %v819, 0.0
        %v1033 = vmax.f32 %v1022, 0.0
        %v1034 = vmax.f32 %v822, 0.0
        %v1035 = vmax.f32 %v1025, 0.0
        %v1036 = vmax.f32 %v825, 0.0
        %v1037 = vmax.f32 %v1028, 0.0
        %v1038 = vld [vmem:[#allocation8] sm:$0xff]
        %v1039 = vld [vmem:[#allocation8 + $0x8] sm:$0xff]
        %v1040 = vld [vmem:[#allocation8 + $0x10] sm:$0xff]
        %v1041 = vld [vmem:[#allocation8 + $0x18] sm:$0xff]
        %v1042 = vld [vmem:[#allocation8 + $0x20] sm:$0xff]
        %v1043 = vld [vmem:[#allocation8 + $0x28] sm:$0xff]
        %v1044 = vld [vmem:[#allocation8 + $0x30] sm:$0xff]
        %v1045 = vld [vmem:[#allocation8 + $0x38] sm:$0xff]
        %v1046 = vld [vmem:[#allocation8 + $0x40] sm:$0xff]
        %v1047 = vld [vmem:[#allocation8 + $0x48] sm:$0xff]
        %v1048 = vld [vmem:[#allocation8 + $0x50] sm:$0xff]
        %v1049 = vld [vmem:[#allocation8 + $0x58] sm:$0xff]
        %v1050 = vld [vmem:[#allocation8 + $0x60] sm:$0xff]
        %v1051 = vld [vmem:[#allocation8 + $0x68] sm:$0xff]
        %v1052 = vld [vmem:[#allocation8 + $0x70] sm:$0xff]
        %v1053 = vld [vmem:[#allocation8 + $0x78] sm:$0xff]
        %v1054 = vld [vmem:[#allocation8 + $0x80] sm:$0xff]
        %v1055 = vld [vmem:[#allocation8 + $0x88] sm:$0xff]
        %v1056 = vld [vmem:[#allocation8 + $0x90] sm:$0xff]
        %v1057 = vld [vmem:[#allocation8 + $0x98] sm:$0xff]
        %v1058 = vld [vmem:[#allocation8 + $0xa0] sm:$0xff]
        %v1059 = vld [vmem:[#allocation8 + $0xa8] sm:$0xff]
        %v1060 = vld [vmem:[#allocation8 + $0xb0] sm:$0xff]
        %v1061 = vld [vmem:[#allocation8 + $0xb8] sm:$0xff]
        %v1062 = vld [vmem:[#allocation8 + $0xc0] sm:$0xff]
        %v1063 = vld [vmem:[#allocation8 + $0xc8] sm:$0xff]
        %v1064 = vld [vmem:[#allocation8 + $0xd0] sm:$0xff]
        %v1065 = vld [vmem:[#allocation8 + $0xd8] sm:$0xff]
        %v1066 = vld [vmem:[#allocation8 + $0xe0] sm:$0xff]
        %v1067 = vld [vmem:[#allocation8 + $0xe8] sm:$0xff]
        %v1068 = vld [vmem:[#allocation8 + $0xf0] sm:$0xff]
        %v1069 = vld [vmem:[#allocation8 + $0xf8] sm:$0xff]
        %v1070 = vld [vmem:[#allocation8 + $0x100] sm:$0xff]
        %v1071 = vld [vmem:[#allocation8 + $0x108] sm:$0xff]
        %v1072 = vld [vmem:[#allocation8 + $0x110] sm:$0xff]
        %v1073 = vld [vmem:[#allocation8 + $0x118] sm:$0xff]
        %v1074 = vld [vmem:[#allocation8 + $0x120] sm:$0xff]
        %v1075 = vld [vmem:[#allocation8 + $0x128] sm:$0xff]
        %v1076 = vld [vmem:[#allocation8 + $0x130] sm:$0xff]
        %v1077 = vld [vmem:[#allocation8 + $0x138] sm:$0xff]
        %v1078 = vld [vmem:[#allocation8 + $0x140] sm:$0xff]
        %v1079 = vld [vmem:[#allocation8 + $0x148] sm:$0xff]
        %v1080 = vld [vmem:[#allocation8 + $0x150] sm:$0xff]
        %v1081 = vld [vmem:[#allocation8 + $0x158] sm:$0xff]
        %v1082 = vld [vmem:[#allocation8 + $0x160] sm:$0xff]
        %v1083 = vld [vmem:[#allocation8 + $0x168] sm:$0xff]
        %v1084 = vld [vmem:[#allocation8 + $0x170] sm:$0xff]
        %v1085 = vld [vmem:[#allocation8 + $0x178] sm:$0xff]
        %v1086 = vld [vmem:[#allocation8 + $0x180] sm:$0xff]
        %v1087 = vld [vmem:[#allocation8 + $0x188] sm:$0xff]
        %v1088 = vld [vmem:[#allocation8 + $0x190] sm:$0xff]
        %v1089 = vld [vmem:[#allocation8 + $0x198] sm:$0xff]
        %v1090 = vld [vmem:[#allocation8 + $0x1a0] sm:$0xff]
        %v1091 = vld [vmem:[#allocation8 + $0x1a8] sm:$0xff]
        %v1092 = vld [vmem:[#allocation8 + $0x1b0] sm:$0xff]
        %v1093 = vld [vmem:[#allocation8 + $0x1b8] sm:$0xff]
        %v1094 = vld [vmem:[#allocation8 + $0x1c0] sm:$0xff]
        %v1095 = vld [vmem:[#allocation8 + $0x1c8] sm:$0xff]
        %v1096 = vld [vmem:[#allocation8 + $0x1d0] sm:$0xff]
        %v1097 = vld [vmem:[#allocation8 + $0x1d8] sm:$0xff]
        %v1098 = vld [vmem:[#allocation8 + $0x1e0] sm:$0xff]
        %v1099 = vld [vmem:[#allocation8 + $0x1e8] sm:$0xff]
        %v1100 = vld [vmem:[#allocation8 + $0x1f0] sm:$0xff]
        %v1101 = vld [vmem:[#allocation8 + $0x1f8] sm:$0xff]
        %v1102 = vld [vmem:[%s4] sm:$0x3]
        %v1104 = vperm.slane %v1102, 0
        %v1105 = vperm.slane %v1102, 1
        %1108 = vmatpush.msra.mxu0 %v1068
        %1109 = vmatpush.msra.mxu0 %v1066
        %1110 = vmatpush.msra.mxu0 %v1064
        %1111 = vmatpush.msra.mxu0 %v1062
        %1112 = vmatpush.msra.mxu0 %v1060
        %1113 = vmatpush.msra.mxu0 %v1058
        %1114 = vmatpush.msra.mxu0 %v1056
        %1115 = vmatpush.msra.mxu0 %v1054
        %1116 = vmatpush.msra.mxu0 %v1052
        %1117 = vmatpush.msra.mxu0 %v1050
        %1118 = vmatpush.msra.mxu0 %v1048
        %1119 = vmatpush.msra.mxu0 %v1046
        %1120 = vmatpush.msra.mxu0 %v1044
        %1121 = vmatpush.msra.mxu0 %v1042
        %1122 = vmatpush.msra.mxu0 %v1040
        %1123 = vmatpush.msra.mxu0 %v1038
        %1124 = vmatmul.f32.gmra.mxu0 %v1030
        %v1125 = vpop.f32.mrf.mxu0
        %v1126 = vadd.f32 %v1104, %v1125
        %1127 = vmatmul.f32.gmra.mxu0 %v1032
        %v1128 = vpop.f32.mrf.mxu0
        %v1129 = vadd.f32 %v1104, %v1128
        %1130 = vmatmul.f32.gmra.mxu0 %v1034
        %v1131 = vpop.f32.mrf.mxu0
        %v1132 = vadd.f32 %v1104, %v1131
        %1133 = vmatmul.f32.gmra.mxu0 %v1036
        %v1134 = vpop.f32.mrf.mxu0
        %v1135 = vadd.f32 %v1104, %v1134
        %1136 = vdwg.mxu0
        %1137 = vmatpush.msra.mxu0 %v1100
        %1138 = vmatpush.msra.mxu0 %v1098
        %1139 = vmatpush.msra.mxu0 %v1096
        %1140 = vmatpush.msra.mxu0 %v1094
        %1141 = vmatpush.msra.mxu0 %v1092
        %1142 = vmatpush.msra.mxu0 %v1090
        %1143 = vmatpush.msra.mxu0 %v1088
        %1144 = vmatpush.msra.mxu0 %v1086
        %1145 = vmatpush.msra.mxu0 %v1084
        %1146 = vmatpush.msra.mxu0 %v1082
        %1147 = vmatpush.msra.mxu0 %v1080
        %1148 = vmatpush.msra.mxu0 %v1078
        %1149 = vmatpush.msra.mxu0 %v1076
        %1150 = vmatpush.msra.mxu0 %v1074
        %1151 = vmatpush.msra.mxu0 %v1072
        %1152 = vmatpush.msra.mxu0 %v1070
        %1153 = vmatmul.f32.gmra.mxu0 %v1031
        %v1154 = vpop.f32.mrf.mxu0
        %v1155 = vadd.f32 %v1126, %v1154
        %1156 = vmatmul.f32.gmra.mxu0 %v1033
        %v1157 = vpop.f32.mrf.mxu0
        %v1158 = vadd.f32 %v1129, %v1157
        %1159 = vmatmul.f32.gmra.mxu0 %v1035
        %v1160 = vpop.f32.mrf.mxu0
        %v1161 = vadd.f32 %v1132, %v1160
        %1162 = vmatmul.f32.gmra.mxu0 %v1037
        %v1163 = vpop.f32.mrf.mxu0
        %v1164 = vadd.f32 %v1135, %v1163
        %1165 = vdwg.mxu0
        %1166 = vmatpush.msra.mxu0 %v1069
        %1167 = vmatpush.msra.mxu0 %v1067
        %1168 = vmatpush.msra.mxu0 %v1065
        %1169 = vmatpush.msra.mxu0 %v1063
        %1170 = vmatpush.msra.mxu0 %v1061
        %1171 = vmatpush.msra.mxu0 %v1059
        %1172 = vmatpush.msra.mxu0 %v1057
        %1173 = vmatpush.msra.mxu0 %v1055
        %1174 = vmatpush.msra.mxu0 %v1053
        %1175 = vmatpush.msra.mxu0 %v1051
        %1176 = vmatpush.msra.mxu0 %v1049
        %1177 = vmatpush.msra.mxu0 %v1047
        %1178 = vmatpush.msra.mxu0 %v1045
        %1179 = vmatpush.msra.mxu0 %v1043
        %1180 = vmatpush.msra.mxu0 %v1041
        %1181 = vmatpush.msra.mxu0 %v1039
        %1182 = vmatmul.f32.gmra.mxu0 %v1030
        %v1183 = vpop.f32.mrf.mxu0
        %v1184 = vadd.f32 %v1105, %v1183
        %1185 = vmatmul.f32.gmra.mxu0 %v1032
        %v1186 = vpop.f32.mrf.mxu0
        %v1187 = vadd.f32 %v1105, %v1186
        %1188 = vmatmul.f32.gmra.mxu0 %v1034
        %v1189 = vpop.f32.mrf.mxu0
        %v1190 = vadd.f32 %v1105, %v1189
        %1191 = vmatmul.f32.gmra.mxu0 %v1036
        %v1192 = vpop.f32.mrf.mxu0
        %v1193 = vadd.f32 %v1105, %v1192
        %1194 = vdwg.mxu0
        %1195 = vmatpush.msra.mxu0 %v1101
        %1196 = vmatpush.msra.mxu0 %v1099
        %1197 = vmatpush.msra.mxu0 %v1097
        %1198 = vmatpush.msra.mxu0 %v1095
        %1199 = vmatpush.msra.mxu0 %v1093
        %1200 = vmatpush.msra.mxu0 %v1091
        %1201 = vmatpush.msra.mxu0 %v1089
        %1202 = vmatpush.msra.mxu0 %v1087
        %1203 = vmatpush.msra.mxu0 %v1085
        %1204 = vmatpush.msra.mxu0 %v1083
        %1205 = vmatpush.msra.mxu0 %v1081
        %1206 = vmatpush.msra.mxu0 %v1079
        %1207 = vmatpush.msra.mxu0 %v1077
        %1208 = vmatpush.msra.mxu0 %v1075
        %1209 = vmatpush.msra.mxu0 %v1073
        %1210 = vmatpush.msra.mxu0 %v1071
        %1211 = vmatmul.f32.gmra.mxu0 %v1031
        %v1212 = vpop.f32.mrf.mxu0
        %v1213 = vadd.f32 %v1184, %v1212
        %1214 = vmatmul.f32.gmra.mxu0 %v1033
        %v1215 = vpop.f32.mrf.mxu0
        %v1216 = vadd.f32 %v1187, %v1215
        %1217 = vmatmul.f32.gmra.mxu0 %v1035
        %v1218 = vpop.f32.mrf.mxu0
        %v1219 = vadd.f32 %v1190, %v1218
        %1220 = vmatmul.f32.gmra.mxu0 %v1037
        %v1221 = vpop.f32.mrf.mxu0
        %v1222 = vadd.f32 %v1193, %v1221
        %1223 = vdwg.mxu0
        %v1224 = vmax.f32 %v1155, 0.0
        %v1225 = vmax.f32 %v1213, 0.0
        %v1226 = vmax.f32 %v1158, 0.0
        %v1227 = vmax.f32 %v1216, 0.0
        %v1228 = vmax.f32 %v1161, 0.0
        %v1229 = vmax.f32 %v1219, 0.0
        %v1230 = vmax.f32 %v1164, 0.0
        %v1231 = vmax.f32 %v1222, 0.0
        %v1232 = vld [vmem:[#allocation10] sm:$0xff]
        %v1233 = vld [vmem:[#allocation10 + $0x8] sm:$0xff]
        %v1234 = vld [vmem:[#allocation10 + $0x10] sm:$0xff]
        %v1235 = vld [vmem:[#allocation10 + $0x18] sm:$0xff]
        %v1236 = vld [vmem:[#allocation10 + $0x20] sm:$0xff]
        %v1237 = vld [vmem:[#allocation10 + $0x28] sm:$0xff]
        %v1238 = vld [vmem:[#allocation10 + $0x30] sm:$0xff]
        %v1239 = vld [vmem:[#allocation10 + $0x38] sm:$0xff]
        %v1240 = vld [vmem:[#allocation10 + $0x40] sm:$0xff]
        %v1241 = vld [vmem:[#allocation10 + $0x48] sm:$0xff]
        %v1242 = vld [vmem:[#allocation10 + $0x50] sm:$0xff]
        %v1243 = vld [vmem:[#allocation10 + $0x58] sm:$0xff]
        %v1244 = vld [vmem:[#allocation10 + $0x60] sm:$0xff]
        %v1245 = vld [vmem:[#allocation10 + $0x68] sm:$0xff]
        %v1246 = vld [vmem:[#allocation10 + $0x70] sm:$0xff]
        %v1247 = vld [vmem:[#allocation10 + $0x78] sm:$0xff]
        %v1248 = vld [vmem:[#allocation10 + $0x80] sm:$0xff]
        %v1249 = vld [vmem:[#allocation10 + $0x88] sm:$0xff]
        %v1250 = vld [vmem:[#allocation10 + $0x90] sm:$0xff]
        %v1251 = vld [vmem:[#allocation10 + $0x98] sm:$0xff]
        %v1252 = vld [vmem:[#allocation10 + $0xa0] sm:$0xff]
        %v1253 = vld [vmem:[#allocation10 + $0xa8] sm:$0xff]
        %v1254 = vld [vmem:[#allocation10 + $0xb0] sm:$0xff]
        %v1255 = vld [vmem:[#allocation10 + $0xb8] sm:$0xff]
        %v1256 = vld [vmem:[#allocation10 + $0xc0] sm:$0xff]
        %v1257 = vld [vmem:[#allocation10 + $0xc8] sm:$0xff]
        %v1258 = vld [vmem:[#allocation10 + $0xd0] sm:$0xff]
        %v1259 = vld [vmem:[#allocation10 + $0xd8] sm:$0xff]
        %v1260 = vld [vmem:[#allocation10 + $0xe0] sm:$0xff]
        %v1261 = vld [vmem:[#allocation10 + $0xe8] sm:$0xff]
        %v1262 = vld [vmem:[#allocation10 + $0xf0] sm:$0xff]
        %v1263 = vld [vmem:[#allocation10 + $0xf8] sm:$0xff]
        %v1264 = vld [vmem:[%s6] sm:$0x1]
        %v1266 = vperm.slane %v1264, 0
        %1268 = vmatpush.msra.mxu0 %v1247
        %1269 = vmatpush.msra.mxu0 %v1246
        %1270 = vmatpush.msra.mxu0 %v1245
        %1271 = vmatpush.msra.mxu0 %v1244
        %1272 = vmatpush.msra.mxu0 %v1243
        %1273 = vmatpush.msra.mxu0 %v1242
        %1274 = vmatpush.msra.mxu0 %v1241
        %1275 = vmatpush.msra.mxu0 %v1240
        %1276 = vmatpush.msra.mxu0 %v1239
        %1277 = vmatpush.msra.mxu0 %v1238
        %1278 = vmatpush.msra.mxu0 %v1237
        %1279 = vmatpush.msra.mxu0 %v1236
        %1280 = vmatpush.msra.mxu0 %v1235
        %1281 = vmatpush.msra.mxu0 %v1234
        %1282 = vmatpush.msra.mxu0 %v1233
        %1283 = vmatpush.msra.mxu0 %v1232
        %1284 = vmatmul.f32.gmra.mxu0 %v1224
        %v1285 = vpop.f32.mrf.mxu0
        %v1286 = vadd.f32 %v1266, %v1285
        %1287 = vmatmul.f32.gmra.mxu0 %v1226
        %v1288 = vpop.f32.mrf.mxu0
        %v1289 = vadd.f32 %v1266, %v1288
        %1290 = vmatmul.f32.gmra.mxu0 %v1228
        %v1291 = vpop.f32.mrf.mxu0
        %v1292 = vadd.f32 %v1266, %v1291
        %1293 = vmatmul.f32.gmra.mxu0 %v1230
        %v1294 = vpop.f32.mrf.mxu0
        %v1295 = vadd.f32 %v1266, %v1294
        %1296 = vdwg.mxu0
        %1297 = vmatpush.msra.mxu0 %v1263
        %1298 = vmatpush.msra.mxu0 %v1262
        %1299 = vmatpush.msra.mxu0 %v1261
        %1300 = vmatpush.msra.mxu0 %v1260
        %1301 = vmatpush.msra.mxu0 %v1259
        %1302 = vmatpush.msra.mxu0 %v1258
        %1303 = vmatpush.msra.mxu0 %v1257
        %1304 = vmatpush.msra.mxu0 %v1256
        %1305 = vmatpush.msra.mxu0 %v1255
        %1306 = vmatpush.msra.mxu0 %v1254
        %1307 = vmatpush.msra.mxu0 %v1253
        %1308 = vmatpush.msra.mxu0 %v1252
        %1309 = vmatpush.msra.mxu0 %v1251
        %1310 = vmatpush.msra.mxu0 %v1250
        %1311 = vmatpush.msra.mxu0 %v1249
        %1312 = vmatpush.msra.mxu0 %v1248
        %1313 = vmatmul.f32.gmra.mxu0 %v1225
        %v1314 = vpop.f32.mrf.mxu0
        %v1315 = vadd.f32 %v1286, %v1314
        %1316 = vmatmul.f32.gmra.mxu0 %v1227
        %v1317 = vpop.f32.mrf.mxu0
        %v1318 = vadd.f32 %v1289, %v1317
        %1319 = vmatmul.f32.gmra.mxu0 %v1229
        %v1320 = vpop.f32.mrf.mxu0
        %v1321 = vadd.f32 %v1292, %v1320
        %1322 = vmatmul.f32.gmra.mxu0 %v1231
        %v1323 = vpop.f32.mrf.mxu0
        %v1324 = vadd.f32 %v1295, %v1323
        %1325 = vdwg.mxu0
        %1326 = vst [vmem:[%s363] sm:$0xff] %v1315
        %1327 = vst [vmem:[%s363 + $0x8] sm:$0xff] %v1318
        %1328 = vst [vmem:[%s363 + $0x10] sm:$0xff] %v1321
        %1329 = vst [vmem:[%s363 + $0x18] sm:$0xff] %v1324
        %s1330 = sand.u32 %s186, 1
        %s1331 = scalar_lea.sflag [#allocation4], %s1330
        %s1332 = sand.u32 %s186, 1
        %s1333 = smul.addr %s1332, 32
        %s1334 = scalar_lea.vmem [#allocation11], %s1333
        // Predicated region
        $region69: #{tpu_custom_call.1} parent=47 // pred_check
          %p1335 = pneg %p196
        $region70: #{tpu_custom_call.1} parent=47 // pred_check_branch
          %1337 = sbr.rel (%p1335) target = $region72
        $region71: #{tpu_custom_call.1} parent=47 // pred_region
          %s1338 = smul.u32 4, %s26
          %1340 = vsyncadd %s1331, 0
          %s1341 = smul.addr %s1338, 8
          %s1342 = scalar_lea.hbm %s7, %s1341
          %s1343 = sshll.u32 %s1334, 4
          %s1344 = int_to_ptr.vmem [resolvable:$true] %s1343
          %s1345 = sshll.u32 %s1342, 4
          %s1346 = int_to_ptr.hbm [resolvable:$true] %s1345
          %1351 = dma.vmem_to_hbm [thread:$0]  %s1344, 512, %s1346, %s1331, 128, 128, 8
        $region72: #{tpu_custom_call.1} parent=47 // pred_fallthru
          _
      $region48: #{tpu_custom_call.1} parent=5 // pred_fallthru
        _
      %p1352 = scmp.le.s32.totalorder 2, %s21
      // Predicated region
      $region73: #{tpu_custom_call.1} parent=5 // pred_check
        %p1353 = pneg %p1352
      $region74: #{tpu_custom_call.1} parent=5 // pred_check_branch
        %1355 = sbr.rel (%p1353) target = $region76
      $region75: #{tpu_custom_call.1} parent=5 // pred_region
        %s1356 = ssub.s32 %s21, 2
        // Predicated region
        $region77: #{tpu_custom_call.1} parent=75 // pred_check
          %p1357 = pneg %p202
        $region78: #{tpu_custom_call.1} parent=75 // pred_check_branch
          %1359 = sbr.rel (%p1357) target = $region80
        $region79: #{tpu_custom_call.1} parent=75 // pred_region
          %s1360 = sand.u32 %s187, 1
          %s1361 = scalar_lea.sflag [#allocation4], %s1360
          %s1362 = sand.u32 %s187, 1
          %s1363 = smul.addr %s1362, 32
          %s1364 = scalar_lea.vmem [#allocation11], %s1363
          %1366 = dma.done %s1361, 512
        $region80: #{tpu_custom_call.1} parent=75 // pred_fallthru
          _
      $region76: #{tpu_custom_call.1} parent=5 // pred_fallthru
        _
    $region6: #{tpu_custom_call.1} parent=1 // loop_footer
      %s25 = sadd.s32 1, %s21
    $region7: #{tpu_custom_call.1} parent=1 // loop_footer_branch
      %20 = sbr.rel target = $region3
    $region8: #{tpu_custom_call.1} parent=1 // loop_exit
      _
    %1367 = vsyncpa [#allocation3], 1
    %s1368 = scalar_lea.sflag [#allocation3], 1
    %1369 = vsyncpa %s1368, 1
    %1370 = vsyncpa [#allocation6], 1
    %1371 = vsyncpa [#allocation9], 1
    %1372 = vsyncpa [#allocation4], 1
    %s1373 = scalar_lea.sflag [#allocation4], 1
    %1374 = vsyncpa %s1373, 1

</llo_original>
